<compile_context>
chip_gen: v6e
topology: v6e:2x2x1
jax: 0.10.0
libtpu: 0.0.40
codegen_flags: <defaults>
</compile_context>

<pallas_src>
import math
from functools import partial

import jax
import jax.numpy as jnp
from jax import lax
from jax.experimental import pallas as pl
from jax.experimental.pallas import tpu as pltpu


# ----------------------------------------------------------------------------
# Pallas kernel: one (batch, group) step = QKV proj -> attention -> out proj.
# ----------------------------------------------------------------------------
def _group_attn_kernel(x_ref, wqkv_ref, wproj_ref, bproj_ref, o_ref, *,
                       num_heads, head_dim, m_valid):
    m_pad = x_ref.shape[2]
    C = num_heads * head_dim
    dtype = x_ref.dtype

    x = x_ref[0, 0]                                             # (M_pad, C)

    # Fused QKV projection: one wide MXU matmul (softmax scale pre-folded
    # into the Q columns of W_qkv on the host).
    qkv = jnp.dot(x, wqkv_ref[...],
                  preferred_element_type=jnp.float32)           # (M_pad, 3C) f32

    # Low-precision operands for the attention matmuls (accumulate in f32).
    qkv = qkv.astype(dtype)

    # (M_pad, 3C) -> (3H, M_pad, D): single head-axis relayout on cast data.
    qkv = qkv.reshape(m_pad, 3 * num_heads, head_dim)
    qkv = jnp.transpose(qkv, (1, 0, 2))                         # (3H, M_pad, D)
    q = qkv[:num_heads]                                         # (H, M_pad, D)
    k = qkv[num_heads:2 * num_heads]
    v = qkv[2 * num_heads:]

    # Batched per-head attention (flash-style einsums -> batched MXU matmuls).
    logits = jnp.einsum('hmd,hnd->hmn', q, k,
                        preferred_element_type=jnp.float32)     # (H, M_pad, M_pad)
    if m_valid < m_pad:
        # Mask ONLY the sublane-padding columns added by this wrapper; the
        # reference module's own Np-padding stays unmasked (matches torch).
        col = lax.broadcasted_iota(jnp.int32, (1, m_pad, m_pad), 2)
        logits = jnp.where(col < m_valid, logits, jnp.float32(-1e30))

    mmax = jnp.max(logits, axis=-1, keepdims=True)
    e = jnp.exp(logits - mmax)
    denom = jnp.sum(e, axis=-1, keepdims=True)                  # (H, M_pad, 1)

    # attn_drop has p=0.0 -> identity.  Deferred normalization: PV first,
    # then scale the (H, M_pad, D) result by 1/denom (EUP reciprocal).
    o = jnp.einsum('hmn,hnd->hmd', e.astype(dtype), v,
                   preferred_element_type=jnp.float32)          # (H, M_pad, D) f32
    o = o * pl.reciprocal(denom, approx=True)

    # Token-major, head-major channels (matches the torch reshape), then the
    # output projection as one wide MXU matmul.  proj_drop p=0.0 -> identity.
    o = jnp.transpose(o.astype(dtype), (1, 0, 2)).reshape(m_pad, C)
    y = jnp.dot(o, wproj_ref[...],
                preferred_element_type=jnp.float32) + bproj_ref[...]
    o_ref[0, 0] = y.astype(o_ref.dtype)


# ----------------------------------------------------------------------------
# Wrapper: padding / permutation glue + pallas_call.
# ----------------------------------------------------------------------------
def _const_weight_spec(shape):
    """BlockSpec for a grid-invariant weight; single-buffered to save VMEM."""
    index_map = lambda b, g: (0,) * len(shape)
    try:
        return pl.BlockSpec(shape, index_map, pipeline_mode=pl.Buffered(1))
    except Exception:  # API drift: fall back to default (double) buffering.
        return pl.BlockSpec(shape, index_map)


def group_attention(x, params, recursive_index, *,
                    num_heads=8, num_groups1=8, num_groups2=4, perm_key=None):
    B, N, C = x.shape
    assert C % num_heads == 0, "dim must be divisible by num_heads (torch .view)"
    head_dim = C // num_heads
    scale = head_dim ** (-0.5)

    idx = None
    if not recursive_index:
        num_groups = num_groups1
    else:
        num_groups = num_groups2
        if num_groups != 1:
            # TODO(synk): torch.randperm's RNG stream is not reproduced;
            # jax.random.permutation is semantically equivalent.
            idx = jax.random.permutation(perm_key, N)
            x = x[:, idx, :]

    Np = int(math.ceil(N / num_groups) * num_groups)
    M = Np // num_groups                       # group size seen by the reference
    M_pad = ((M + 7) // 8) * 8                 # sublane-friendly padded group size

    # Pad the sequence to Np (these pads DO join the softmax, as in torch),
    # split into groups, then pad each group to M_pad (extra pads are masked
    # inside the kernel).
    x = jnp.pad(x, ((0, 0), (0, Np - N), (0, 0)))
    x4 = x.reshape(B, num_groups, M, C)
    x4 = jnp.pad(x4, ((0, 0), (0, 0), (0, M_pad - M), (0, 0)))

    # Fold the softmax scale into the Q columns of W_qkv (free, host-side).
    wqkv = params["wqkv"]                                    # (C, 3C)
    wqkv = jnp.concatenate([wqkv[:, :C] * scale, wqkv[:, C:]], axis=1)
    wproj = params["wproj"]                                  # (C, C)
    bproj = params["bproj"].reshape(1, C)                    # (1, C)

    kernel = partial(_group_attn_kernel, num_heads=num_heads,
                     head_dim=head_dim, m_valid=M)

    # VMEM budget from actual per-step tiles + f32 intermediates (including
    # the (H, M, M) logits), capped with headroom below the queried physical
    # VMEM of this generation.
    act = x.dtype.itemsize
    wb = wqkv.dtype.itemsize
    f32 = 4
    H = num_heads
    tile_bytes = (
        2 * 2 * M_pad * C * act                         # x + out blocks, double-buffered
        + (C * 3 * C + C * C + C) * wb                  # weights, single-buffered
        + 3 * M_pad * 3 * C * f32                       # qkv (f32 + cast + relayout)
        + 3 * H * M_pad * M_pad * f32                   # logits / e / masked copy
        + 2 * H * M_pad * head_dim * f32                # PV result + normalized
        + 2 * M_pad * C * f32)                          # projected output
    try:
        vmem_cap = int(pltpu.get_tpu_info().vmem_capacity_bytes)
    except Exception:
        vmem_cap = 64 << 20                             # conservative (v7x physical)
    vmem_limit = int(min(max(2 * tile_bytes + (8 << 20), 32 << 20),
                         int(vmem_cap * 0.85)))

    out = pl.pallas_call(
        kernel,
        out_shape=jax.ShapeDtypeStruct((B, num_groups, M_pad, C), x.dtype),
        grid=(B, num_groups),
        in_specs=[
            pl.BlockSpec((1, 1, M_pad, C), lambda b, g: (b, g, 0, 0)),  # x group slab
            _const_weight_spec((C, 3 * C)),                             # W_qkv (scaled)
            _const_weight_spec((C, C)),                                 # W_proj
            _const_weight_spec((1, C)),                                 # b_proj
        ],
        out_specs=pl.BlockSpec((1, 1, M_pad, C), lambda b, g: (b, g, 0, 0)),
        compiler_params=pltpu.CompilerParams(
            dimension_semantics=("parallel", "parallel"),
            vmem_limit_bytes=vmem_limit),
    )(x4, wqkv, wproj, bproj)

    out = out[:, :, :M, :].reshape(B, Np, C)
    if recursive_index and num_groups != 1:
        out = out[:, jnp.argsort(idx), :]
    out = out[:, :N, :]
    return out


# ----------------------------------------------------------------------------
# Pure-JAX reference (mirrors the PyTorch math) for verification.
# ----------------------------------------------------------------------------
def group_attention_ref(x, params, recursive_index, *,
                        num_heads=8, num_groups1=8, num_groups2=4,
                        perm_key=None):
    B, N, C = x.shape
    head_dim = C // num_heads
    scale = head_dim ** (-0.5)

    idx = None
    if not recursive_index:
        num_groups = num_groups1
    else:
        num_groups = num_groups2
        if num_groups != 1:
            idx = jax.random.permutation(perm_key, N)
            x = x[:, idx, :]

    Np = int(math.ceil(N / num_groups) * num_groups)
    M = Np // num_groups
    x = jnp.pad(x, ((0, 0), (0, Np - N), (0, 0)))

    qkv = x @ params["wqkv"]                                   # (B, Np, 3C)
    qkv = qkv.reshape(B, num_groups, M, 3, num_heads, head_dim)
    qkv = jnp.transpose(qkv, (3, 0, 1, 4, 2, 5))               # (3,B,G,H,M,D)
    q, k, v = qkv[0], qkv[1], qkv[2]
    attn = (q @ jnp.swapaxes(k, -2, -1)) * scale
    attn = jax.nn.softmax(attn, axis=-1)
    o = attn @ v                                               # (B,G,H,M,D)
    o = jnp.transpose(o, (0, 1, 3, 2, 4)).reshape(B, num_groups, M, C)
    o = o.reshape(B, Np, C)
    if recursive_index and num_groups != 1:
        o = o[:, jnp.argsort(idx), :]
    o = o[:, :N, :]
    return o @ params["wproj"] + params["bproj"]


# ----------------------------------------------------------------------------
if __name__ == "__main__":
    B, N, C = 2, 20, 32
    num_heads, num_groups1, num_groups2 = 8, 8, 4

    key = jax.random.PRNGKey(0)
    kx, kw1, kw2, kb, kperm = jax.random.split(key, 5)

    x = jax.random.normal(kx, (B, N, C), dtype=jnp.float32)

    # qkv_bias=False in the module -> no qkv bias; proj has weight + bias.
    params = {
        "wqkv": jax.random.normal(kw1, (C, 3 * C), dtype=jnp.float32) * 0.02,
        "wproj": jax.random.normal(kw2, (C, C), dtype=jnp.float32) * 0.02,
        "bproj": jax.random.normal(kb, (C,), dtype=jnp.float32) * 0.02,
    }

    ok = True
    for recursive_index in (False, True):
        out = group_attention(x, params, recursive_index,
                              num_heads=num_heads, num_groups1=num_groups1,
                              num_groups2=num_groups2, perm_key=kperm)
        out = jax.block_until_ready(out)
        ref = group_attention_ref(x, params, recursive_index,
                                  num_heads=num_heads, num_groups1=num_groups1,
                                  num_groups2=num_groups2, perm_key=kperm)
        ref = jax.block_until_ready(ref)
        if out.shape != (B, N, C):
            ok = False
        # slightly loose tolerance: approx EUP reciprocal in the softmax
        if not jnp.allclose(out, ref, atol=2e-3, rtol=2e-3):
            ok = False

    print("KERNEL_OK" if ok else "KERNEL_MISMATCH")
</pallas_src>

<mosaic_0001>
module attributes {stable_mosaic.version = 11 : i64} {
  func.func @_group_attn_kernel(%arg0: i32, %arg1: i32, %arg2: memref<1x1x8x32xf32, #tpu.memory_space<vmem>>, %arg3: memref<32x96xf32, #tpu.memory_space<vmem>>, %arg4: memref<32x32xf32, #tpu.memory_space<vmem>>, %arg5: memref<1x32xf32, #tpu.memory_space<vmem>>, %arg6: memref<1x1x8x32xf32, #tpu.memory_space<vmem>>) attributes {dimension_semantics = [#tpu.dimension_semantics<parallel>, #tpu.dimension_semantics<parallel>], iteration_bounds = array<i64: 2, 8>, scalar_prefetch = 0 : i64, scratch_operands = 0 : i64, tpu.core_type = #tpu.core_type<tc>, window_params = [{transform_indices = @transform_0, window_bounds = array<i64: 1, 1, 8, 32>}, {pipeline_mode = #tpu.pipeline_mode<synchronous>, transform_indices = @transform_1, window_bounds = array<i64: 32, 96>}, {pipeline_mode = #tpu.pipeline_mode<synchronous>, transform_indices = @transform_2, window_bounds = array<i64: 32, 32>}, {pipeline_mode = #tpu.pipeline_mode<synchronous>, transform_indices = @transform_3, window_bounds = array<i64: 1, 32>}, {transform_indices = @transform_4, window_bounds = array<i64: 1, 1, 8, 32>}]} {
    %c0 = arith.constant 0 : index
    %c0_0 = arith.constant 0 : index
    %c0_1 = arith.constant 0 : index
    %c0_2 = arith.constant 0 : index
    %0 = vector.load %arg2[%c0, %c0_0, %c0_1, %c0_2] : memref<1x1x8x32xf32, #tpu.memory_space<vmem>>, vector<1x1x8x32xf32>
    %1 = vector.shape_cast %0 : vector<1x1x8x32xf32> to vector<8x32xf32>
    %c0_3 = arith.constant 0 : index
    %c0_4 = arith.constant 0 : index
    %2 = vector.load %arg3[%c0_3, %c0_4] : memref<32x96xf32, #tpu.memory_space<vmem>>, vector<32x96xf32>
    %cst = arith.constant dense<0.000000e+00> : vector<8x96xf32>
    %3 = tpu.matmul %1, %2, %cst {dimension_numbers = #tpu.dot_dimension_numbers<[1], [0], [0], [1], [0, 0, 1, 1], [], []>} : vector<8x32xf32>, vector<32x96xf32>, vector<8x96xf32> -> vector<8x96xf32>
    %4 = vector.shape_cast %3 : vector<8x96xf32> to vector<8x24x4xf32>
    %5 = tpu.transpose %4, [1, 0, 2] : vector<8x24x4xf32> -> vector<24x8x4xf32>
    %6 = vector.extract_strided_slice %5 {offsets = [0, 0, 0], sizes = [8, 8, 4], strides = [1, 1, 1]} : vector<24x8x4xf32> to vector<8x8x4xf32>
    %7 = vector.extract_strided_slice %5 {offsets = [8, 0, 0], sizes = [8, 8, 4], strides = [1, 1, 1]} : vector<24x8x4xf32> to vector<8x8x4xf32>
    %8 = vector.extract_strided_slice %5 {offsets = [16, 0, 0], sizes = [8, 8, 4], strides = [1, 1, 1]} : vector<24x8x4xf32> to vector<8x8x4xf32>
    "tpu.trace_start"() <{level = 10 : i32, message = "hmd,hnd->hmn"}> : () -> ()
    %cst_5 = arith.constant dense<0.000000e+00> : vector<8x8x8xf32>
    %9 = tpu.matmul %6, %7, %cst_5 {dimension_numbers = #tpu.dot_dimension_numbers<[2], [2], [1], [1], [0, 0, 0, 1, 1, 1], [0], [0]>} : vector<8x8x4xf32>, vector<8x8x4xf32>, vector<8x8x8xf32> -> vector<8x8x8xf32>
    "tpu.trace_stop"() : () -> ()
    %10 = tpu.iota {dimensions = array<i32: 2>} : vector<1x8x8xi32>
    %c3_i32 = arith.constant 3 : i32
    %11 = vector.broadcast %c3_i32 : i32 to vector<1x8x8xi32>
    %12 = arith.cmpi slt, %10, %11 : vector<1x8x8xi32>
    %cst_6 = arith.constant -1.000000e+30 : f32
    %13 = vector.shape_cast %12 : vector<1x8x8xi1> to vector<1x8x8xi1>
    %14 = vector.broadcast %13 : vector<1x8x8xi1> to vector<8x8x8xi1>
    %15 = vector.broadcast %cst_6 : f32 to vector<8x8x8xf32>
    %16 = arith.select %14, %9, %15 : vector<8x8x8xi1>, vector<8x8x8xf32>
    %cst_7 = arith.constant dense<0xFF800000> : vector<8x8xf32>
    %17 = vector.multi_reduction <maximumf>, %16, %cst_7 [2] : vector<8x8x8xf32> to vector<8x8xf32>
    %18 = vector.shape_cast %17 : vector<8x8xf32> to vector<8x8x1xf32>
    %19 = vector.broadcast %18 : vector<8x8x1xf32> to vector<8x8x8xf32>
    %20 = arith.subf %16, %19 : vector<8x8x8xf32>
    %21 = math.exp %20 : vector<8x8x8xf32>
    %cst_8 = arith.constant dense<0.000000e+00> : vector<8x8xf32>
    %22 = vector.multi_reduction <add>, %21, %cst_8 [2] : vector<8x8x8xf32> to vector<8x8xf32>
    %23 = vector.shape_cast %22 : vector<8x8xf32> to vector<8x8x1xf32>
    "tpu.trace_start"() <{level = 10 : i32, message = "hmn,hnd->hmd"}> : () -> ()
    %cst_9 = arith.constant dense<0.000000e+00> : vector<8x8x4xf32>
    %24 = tpu.matmul %21, %8, %cst_9 {dimension_numbers = #tpu.dot_dimension_numbers<[2], [1], [1], [2], [0, 0, 0, 1, 1, 2], [0], [0]>} : vector<8x8x8xf32>, vector<8x8x4xf32>, vector<8x8x4xf32> -> vector<8x8x4xf32>
    "tpu.trace_stop"() : () -> ()
    %25 = tpu.reciprocal %23 {approx = true} : vector<8x8x1xf32> -> vector<8x8x1xf32>
    %26 = vector.broadcast %25 : vector<8x8x1xf32> to vector<8x8x4xf32>
    %27 = arith.mulf %24, %26 : vector<8x8x4xf32>
    %28 = tpu.transpose %27, [1, 0, 2] : vector<8x8x4xf32> -> vector<8x8x4xf32>
    %29 = vector.shape_cast %28 : vector<8x8x4xf32> to vector<8x32xf32>
    %c0_10 = arith.constant 0 : index
    %c0_11 = arith.constant 0 : index
    %30 = vector.load %arg4[%c0_10, %c0_11] : memref<32x32xf32, #tpu.memory_space<vmem>>, vector<32x32xf32>
    %cst_12 = arith.constant dense<0.000000e+00> : vector<8x32xf32>
    %31 = tpu.matmul %29, %30, %cst_12 {dimension_numbers = #tpu.dot_dimension_numbers<[1], [0], [0], [1], [0, 0, 1, 1], [], []>} : vector<8x32xf32>, vector<32x32xf32>, vector<8x32xf32> -> vector<8x32xf32>
    %c0_13 = arith.constant 0 : index
    %c0_14 = arith.constant 0 : index
    %32 = vector.load %arg5[%c0_13, %c0_14] : memref<1x32xf32, #tpu.memory_space<vmem>>, vector<1x32xf32>
    %33 = vector.broadcast %32 : vector<1x32xf32> to vector<8x32xf32>
    %34 = arith.addf %31, %33 : vector<8x32xf32>
    %c0_15 = arith.constant 0 : index
    %c0_16 = arith.constant 0 : index
    %c0_17 = arith.constant 0 : index
    %c0_18 = arith.constant 0 : index
    %35 = vector.load %arg6[%c0_15, %c0_16, %c0_17, %c0_18] : memref<1x1x8x32xf32, #tpu.memory_space<vmem>>, vector<1x1x8x32xf32>
    %36 = vector.shape_cast %35 : vector<1x1x8x32xf32> to vector<8x32xf32>
    %37 = vector.shape_cast %34 : vector<8x32xf32> to vector<1x1x8x32xf32>
    tpu.vector_store %arg6[%c0_15, %c0_16, %c0_17, %c0_18], %37 {strides = array<i32>} : memref<1x1x8x32xf32, #tpu.memory_space<vmem>>, vector<1x1x8x32xf32>,
    return
  }
  func.func @transform_0(%arg0: i32, %arg1: i32) -> (i32, i32, i32, i32) {
    %c0_i32 = arith.constant 0 : i32
    %c0_i32_0 = arith.constant 0 : i32
    %c0_i32_1 = arith.constant 0 : i32
    return %arg0, %arg1, %c0_i32, %c0_i32_0 : i32, i32, i32, i32
  }
  func.func @transform_1(%arg0: i32, %arg1: i32) -> (i32, i32) {
    %c0_i32 = arith.constant 0 : i32
    %c0_i32_0 = arith.constant 0 : i32
    %c0_i32_1 = arith.constant 0 : i32
    return %c0_i32, %c0_i32_0 : i32, i32
  }
  func.func @transform_2(%arg0: i32, %arg1: i32) -> (i32, i32) {
    %c0_i32 = arith.constant 0 : i32
    %c0_i32_0 = arith.constant 0 : i32
    %c0_i32_1 = arith.constant 0 : i32
    return %c0_i32, %c0_i32_0 : i32, i32
  }
  func.func @transform_3(%arg0: i32, %arg1: i32) -> (i32, i32) {
    %c0_i32 = arith.constant 0 : i32
    %c0_i32_0 = arith.constant 0 : i32
    %c0_i32_1 = arith.constant 0 : i32
    return %c0_i32, %c0_i32_0 : i32, i32
  }
  func.func @transform_4(%arg0: i32, %arg1: i32) -> (i32, i32, i32, i32) {
    %c0_i32 = arith.constant 0 : i32
    %c0_i32_0 = arith.constant 0 : i32
    %c0_i32_1 = arith.constant 0 : i32
    return %arg0, %arg1, %c0_i32, %c0_i32_0 : i32, i32, i32, i32
  }
}

</mosaic_0001>

<llo_original>
// kernel: tpu_custom_call.1
$region0: #{tpu_custom_call.1}
  #allocation0 [shape = 'u32[]', space=smem, size = 0x4, offset = 0x4, fixed_abs, tag = 'smem constant byte address 0x4 - core index']
  #allocation1 [shape = 'u32[144,128]{1,0:T(1,128)}', space=vmem, size = 0x12000, scoped, tag = 'internal scratch']
  %s0 = inlined_call_operand.hbm [shape: f32[2,8,8,32], index: 0, kind: input, shape index: {}]
  %s1 = inlined_call_operand.hbm [shape: f32[32,96], index: 1, kind: input, shape index: {}]
  %s2 = inlined_call_operand.hbm [shape: f32[32,32], index: 2, kind: input, shape index: {}]
  %s3 = inlined_call_operand.vmem [shape: f32[1,32], index: 3, kind: input, shape index: {}]
  %s4 = inlined_call_operand.hbm [shape: f32[2,8,8,32], index: 4, kind: output, shape index: {}]
  %s5 = sld [smem:[#allocation0]]
  $region61: #{tpu_custom_call.1} parent=0
    _
  %s7 = ssub.s32 1, %s5
  %s8 = scalar_select 0, %s7, %s5
  $region1: #{tpu_custom_call.1} parent=0
    #allocation2 [shape = 'u8[8192]{0}', space=vmem, size = 0x2000, scoped, tag = 'input window, operand 0']
    #allocation3 [shape = 's32[2]{0}', space=sflag, size = 0x8, scoped, tag = 'scoped memory for tpu_custom_call.1']
    #allocation4 [shape = 's32[2]{0}', space=sflag, size = 0x8, scoped, tag = 'scoped memory for tpu_custom_call.1']
    #allocation5 [shape = 'u8[16384]{0}', space=vmem, size = 0x4000, scoped, tag = 'input window, operand 1, single buffered']
    #allocation6 [shape = 's32[1]{0}', space=sflag, size = 0x4, scoped, tag = 'scoped memory for tpu_custom_call.1']
    #allocation7 [shape = 'u8[16384]{0}', space=vmem, size = 0x4000, scoped, tag = 'input window, operand 2, single buffered']
    #allocation8 [shape = 'u8[8192]{0}', space=vmem, size = 0x2000, scoped, tag = 'output window, operand 0']
    %9 = vsyncpa [#allocation3], 0
    %s10 = scalar_lea.sflag [#allocation3], 1
    %11 = vsyncpa %s10, 0
    %12 = vsyncpa [#allocation6], 0
    %13 = vsyncpa [#allocation4], 0
    %s14 = scalar_lea.sflag [#allocation4], 1
    %15 = vsyncpa %s14, 0
    loop: start=0, step=1, limit=18
    $region2: #{tpu_custom_call.1} parent=1 // loop_pre_header
      _
    $region3: #{tpu_custom_call.1} parent=1 // loop_header
      %s17 = sphi 0, %s21
      %p18 = scmp.ge.s32.totalorder %s17, 18
      %s24 = sphi 0, %s36
      %s25 = sphi 0, %s32
      %s26 = sphi 0, %s24
      %s27 = sphi 0, %s25
      %s28 = sphi 0, %s26
      %s29 = sphi 0, %s27
      %s41 = sphi 0, %s43
      %s44 = sphi 0, %s41
      %s45 = sphi 0, %s44
      %s61 = sphi 0, %s45
      %s65 = sphi 0, %s65
      %s67 = sphi 0, %s65
      %s68 = sphi 0, %s67
      %s82 = sphi 0, %s68
      %s86 = sphi 0, %s86
      %s88 = sphi 0, %s86
      %s89 = sphi 0, %s88
      %s103 = sphi 0, %s89
      %s107 = sphi 0, %s107
      %s109 = sphi 0, %s107
      %s110 = sphi 0, %s109
      %s124 = sphi 0, %s110
      %s132 = sphi 0, %s134
      %s135 = sphi 0, %s132
      %s136 = sphi 0, %s135
      %s152 = sphi 0, %s136
    $region4: #{tpu_custom_call.1} parent=1 // loop_header_branch
      %20 = sbr.rel (%p18) target = $region8
    $region5: #{tpu_custom_call.1} parent=1 // loop_body
      %s22 = ssub.s32 %s17, 1
      %s23 = ssub.s32 %s17, 2
      %s30 = sadd.s32 1, %s25
      %p31 = scmp.ge.s32.totalorder %s30, 8
      %s32 = scalar_select %p31, 0, %s30
      %s33 = sadd.s32 1, %s24
      %s34 = scalar_select %p31, %s33, %s24
      %p35 = scmp.ge.s32.totalorder %s34, 2
      %s36 = scalar_select %p35, 0, %s34
      %s37 = ssub.s32 %s24, %s36
      %s38 = ssub.s32 %s25, %s32
      %s39 = sor.u32 %s37, %s38
      %p40 = scmp.eq.s32.totalorder %s39, 0
      %s42 = sadd.s32 %s41, 1
      %s43 = scalar_select %p40, %s41, %s42
      %p46 = pneg %p40
      %p47 = scmp.eq.s32.totalorder %s17, 15
      %p48 = por %p46, %p47
      %p49 = scmp.ne.s32.totalorder %s41, %s44
      %p50 = scmp.eq.s32.totalorder %s17, 0
      %p51 = por %p49, %p50
      %p52 = scmp.ne.s32.totalorder %s41, %s44
      %p53 = scmp.eq.s32.totalorder %s22, 15
      %p54 = por %p52, %p53
      %p55 = scmp.ne.s32.totalorder %s44, %s45
      %p56 = scmp.eq.s32.totalorder %s22, 0
      %p57 = por %p55, %p56
      %p58 = scmp.ne.s32.totalorder %s44, %s45
      %p59 = scmp.eq.s32.totalorder %s23, 15
      %p60 = por %p58, %p59
      %p62 = scmp.ne.s32.totalorder %s45, %s61
      %p63 = scmp.eq.s32.totalorder %s23, 0
      %p64 = por %p62, %p63
      %s66 = sadd.s32 %s65, 1
      %p69 = scmp.eq.s32.totalorder %s17, 15
      %p70 = scmp.ne.s32.totalorder %s65, %s67
      %p71 = scmp.eq.s32.totalorder %s17, 0
      %p72 = por %p70, %p71
      %p73 = scmp.ne.s32.totalorder %s65, %s67
      %p74 = scmp.eq.s32.totalorder %s22, 15
      %p75 = por %p73, %p74
      %p76 = scmp.ne.s32.totalorder %s67, %s68
      %p77 = scmp.eq.s32.totalorder %s22, 0
      %p78 = por %p76, %p77
      %p79 = scmp.ne.s32.totalorder %s67, %s68
      %p80 = scmp.eq.s32.totalorder %s23, 15
      %p81 = por %p79, %p80
      %p83 = scmp.ne.s32.totalorder %s68, %s82
      %p84 = scmp.eq.s32.totalorder %s23, 0
      %p85 = por %p83, %p84
      %s87 = sadd.s32 %s86, 1
      %p90 = scmp.eq.s32.totalorder %s17, 15
      %p91 = scmp.ne.s32.totalorder %s86, %s88
      %p92 = scmp.eq.s32.totalorder %s17, 0
      %p93 = por %p91, %p92
      %p94 = scmp.ne.s32.totalorder %s86, %s88
      %p95 = scmp.eq.s32.totalorder %s22, 15
      %p96 = por %p94, %p95
      %p97 = scmp.ne.s32.totalorder %s88, %s89
      %p98 = scmp.eq.s32.totalorder %s22, 0
      %p99 = por %p97, %p98
      %p100 = scmp.ne.s32.totalorder %s88, %s89
      %p101 = scmp.eq.s32.totalorder %s23, 15
      %p102 = por %p100, %p101
      %p104 = scmp.ne.s32.totalorder %s89, %s103
      %p105 = scmp.eq.s32.totalorder %s23, 0
      %p106 = por %p104, %p105
      %s108 = sadd.s32 %s107, 1
      %p111 = scmp.eq.s32.totalorder %s17, 15
      %p112 = scmp.ne.s32.totalorder %s107, %s109
      %p113 = scmp.eq.s32.totalorder %s17, 0
      %p114 = por %p112, %p113
      %p115 = scmp.ne.s32.totalorder %s107, %s109
      %p116 = scmp.eq.s32.totalorder %s22, 15
      %p117 = por %p115, %p116
      %p118 = scmp.ne.s32.totalorder %s109, %s110
      %p119 = scmp.eq.s32.totalorder %s22, 0
      %p120 = por %p118, %p119
      %p121 = scmp.ne.s32.totalorder %s109, %s110
      %p122 = scmp.eq.s32.totalorder %s23, 15
      %p123 = por %p121, %p122
      %p125 = scmp.ne.s32.totalorder %s110, %s124
      %p126 = scmp.eq.s32.totalorder %s23, 0
      %p127 = por %p125, %p126
      %s128 = ssub.s32 %s24, %s36
      %s129 = ssub.s32 %s25, %s32
      %s130 = sor.u32 %s128, %s129
      %p131 = scmp.eq.s32.totalorder %s130, 0
      %s133 = sadd.s32 %s132, 1
      %s134 = scalar_select %p131, %s132, %s133
      %p137 = pneg %p131
      %p138 = scmp.eq.s32.totalorder %s17, 15
      %p139 = por %p137, %p138
      %p140 = scmp.ne.s32.totalorder %s132, %s135
      %p141 = scmp.eq.s32.totalorder %s17, 0
      %p142 = por %p140, %p141
      %p143 = scmp.ne.s32.totalorder %s132, %s135
      %p144 = scmp.eq.s32.totalorder %s22, 15
      %p145 = por %p143, %p144
      %p146 = scmp.ne.s32.totalorder %s135, %s136
      %p147 = scmp.eq.s32.totalorder %s22, 0
      %p148 = por %p146, %p147
      %p149 = scmp.ne.s32.totalorder %s135, %s136
      %p150 = scmp.eq.s32.totalorder %s23, 15
      %p151 = por %p149, %p150
      %p153 = scmp.ne.s32.totalorder %s136, %s152
      %p154 = scmp.eq.s32.totalorder %s23, 0
      %p155 = por %p153, %p154
      %p156 = scmp.le.s32.totalorder 1, %s17
      %p157 = scmp.lt.s32.totalorder %s17, 17
      %p158 = pnand %p156, %p157
      %p159 = pneg %p158
      // Predicated region
      $region9: #{tpu_custom_call.1} parent=5 // pred_check
        _
      $region10: #{tpu_custom_call.1} parent=5 // pred_check_branch
        %161 = sbr.rel (%p158) target = $region12
      $region11: #{tpu_custom_call.1} parent=5 // pred_region
        %s162 = ssub.s32 %s17, 1
        // Predicated region
        $region13: #{tpu_custom_call.1} parent=11 // pred_check
          %p163 = pneg %p78
        $region14: #{tpu_custom_call.1} parent=11 // pred_check_branch
          %165 = sbr.rel (%p163) target = $region16
        $region15: #{tpu_custom_call.1} parent=11 // pred_region
          %s167 = ssub.s32 512, 512
          %168 = vsyncadd [#allocation6], %s167
          %s169 = sshll.u32 [#allocation5], 4
          %s170 = int_to_ptr.vmem [resolvable:$true] %s169
          %175 = dma.hbm_to_vmem [thread:$0]  %s1, 512, %s170, [#allocation6], 128, 128, 8
        $region16: #{tpu_custom_call.1} parent=11 // pred_fallthru
          _
        // Predicated region
        $region17: #{tpu_custom_call.1} parent=11 // pred_check
          %p176 = pneg %p99
        $region18: #{tpu_custom_call.1} parent=11 // pred_check_branch
          %178 = sbr.rel (%p176) target = $region20
        $region19: #{tpu_custom_call.1} parent=11 // pred_region
          %s180 = ssub.s32 512, 512
          %181 = vsyncadd [#allocation6], %s180
          %s182 = sshll.u32 [#allocation7], 4
          %s183 = int_to_ptr.vmem [resolvable:$true] %s182
          %188 = dma.hbm_to_vmem [thread:$0]  %s2, 512, %s183, [#allocation6], 128, 128, 8
        $region20: #{tpu_custom_call.1} parent=11 // pred_fallthru
          _
        // Predicated region
        $region21: #{tpu_custom_call.1} parent=11 // pred_check
          %p189 = pneg %p120
        $region22: #{tpu_custom_call.1} parent=11 // pred_check_branch
          %191 = sbr.rel (%p189) target = $region24
        $region23: #{tpu_custom_call.1} parent=11 // pred_region
          _
        $region24: #{tpu_custom_call.1} parent=11 // pred_fallthru
          _
      $region12: #{tpu_custom_call.1} parent=5 // pred_fallthru
        _
      %p192 = scmp.lt.s32.totalorder %s17, 16
      // Predicated region
      $region25: #{tpu_custom_call.1} parent=5 // pred_check
        %p193 = pneg %p192
      $region26: #{tpu_custom_call.1} parent=5 // pred_check_branch
        %195 = sbr.rel (%p193) target = $region28
      $region27: #{tpu_custom_call.1} parent=5 // pred_region
        // Predicated region
        $region29: #{tpu_custom_call.1} parent=27 // pred_check
          %p196 = pneg %p51
        $region30: #{tpu_custom_call.1} parent=27 // pred_check_branch
          %198 = sbr.rel (%p196) target = $region32
        $region31: #{tpu_custom_call.1} parent=27 // pred_region
          %s199 = sand.u32 %s41, 1
          %s200 = scalar_lea.sflag [#allocation3], %s199
          %s201 = sand.u32 %s41, 1
          %s202 = smul.addr %s201, 8
          %s203 = scalar_lea.vmem [#allocation2], %s202
          %s205 = ssub.s32 128, 128
          %206 = vsyncadd %s200, %s205
          %s207 = smul.addr %s24, 8
          %s208 = sadd.s32 %s25, %s207
          %s209 = smul.addr %s208, 128
          %s210 = scalar_lea.hbm %s0, %s209
          %s212 = sshll.u32 %s203, 4
          %s213 = int_to_ptr.vmem [resolvable:$true] %s212
          %215 = dma.hbm_to_vmem [thread:$0]  %s210, 128, %s213, %s200
        $region32: #{tpu_custom_call.1} parent=27 // pred_fallthru
          _
      $region28: #{tpu_custom_call.1} parent=5 // pred_fallthru
        _
      %p216 = scmp.le.s32.totalorder 1, %s17
      %p217 = scmp.lt.s32.totalorder %s17, 17
      %p218 = pnand %p216, %p217
      %p219 = pneg %p218
      // Predicated region
      $region33: #{tpu_custom_call.1} parent=5 // pred_check
        _
      $region34: #{tpu_custom_call.1} parent=5 // pred_check_branch
        %221 = sbr.rel (%p218) target = $region36
      $region35: #{tpu_custom_call.1} parent=5 // pred_region
        %s222 = ssub.s32 %s17, 1
        %s223 = sand.u32 %s44, 1
        %s224 = scalar_lea.sflag [#allocation3], %s223
        %s225 = sand.u32 %s44, 1
        %s226 = smul.addr %s225, 8
        %s227 = scalar_lea.vmem [#allocation2], %s226
        // Predicated region
        $region37: #{tpu_custom_call.1} parent=35 // pred_check
          %p228 = pneg %p57
        $region38: #{tpu_custom_call.1} parent=35 // pred_check_branch
          %230 = sbr.rel (%p228) target = $region40
        $region39: #{tpu_custom_call.1} parent=35 // pred_region
          %231 = dma.done %s224, 128
        $region40: #{tpu_custom_call.1} parent=35 // pred_fallthru
          _
        // Predicated region
        $region41: #{tpu_custom_call.1} parent=35 // pred_check
          %p232 = pneg %p78
        $region42: #{tpu_custom_call.1} parent=35 // pred_check_branch
          %234 = sbr.rel (%p232) target = $region44
        $region43: #{tpu_custom_call.1} parent=35 // pred_region
          %235 = dma.done [#allocation6], 512
        $region44: #{tpu_custom_call.1} parent=35 // pred_fallthru
          _
        // Predicated region
        $region45: #{tpu_custom_call.1} parent=35 // pred_check
          %p236 = pneg %p99
        $region46: #{tpu_custom_call.1} parent=35 // pred_check_branch
          %238 = sbr.rel (%p236) target = $region48
        $region47: #{tpu_custom_call.1} parent=35 // pred_region
          %239 = dma.done [#allocation6], 512
        $region48: #{tpu_custom_call.1} parent=35 // pred_fallthru
          _
        %s240 = sand.u32 %s44, 1
        %s241 = scalar_lea.sflag [#allocation3], %s240
        %s242 = sand.u32 %s44, 1
        %s243 = smul.addr %s242, 8
        %s244 = scalar_lea.vmem [#allocation2], %s243
        %p245 = pneg %p57
        %p246 = pneg %p54
        %p247 = pneg %p78
        %p248 = pneg %p75
        %p249 = pneg %p99
        %p250 = pneg %p96
        %p251 = pneg %p120
        %p252 = pneg %p117
        %p253 = pneg %p148
        %p254 = pneg %p145
        %s255 = sand.u32 %s135, 1
        %s256 = scalar_lea.sflag [#allocation4], %s255
        %s257 = sand.u32 %s135, 1
        %s258 = smul.addr %s257, 8
        %s259 = scalar_lea.vmem [#allocation8], %s258
        %v260 = vld [vmem:[%s227] sm:$0xff]
        %v261 = vld [vmem:[#allocation5] sm:$0xff]
        %v262 = vld [vmem:[#allocation5 + $0x8] sm:$0xff]
        %v263 = vld [vmem:[#allocation5 + $0x10] sm:$0xff]
        %v264 = vld [vmem:[#allocation5 + $0x18] sm:$0xff]
        %vm265 = vcmask 261120
        %v267 = vsel %vm265, %v260, 0
        %269 = vmatprep.subr.mxu0 0.0
        %270 = vmatpush1.msra.mxu0 0.0
        %271 = vmatprep.subr.mxu0 0.0
        %272 = vmatpush1.msra.mxu0 0.0
        %273 = vmatprep.subr.mxu0 0.0
        %274 = vmatpush1.msra.mxu0 0.0
        %275 = vmatprep.subr.mxu0 0.0
        %276 = vmatpush1.msra.mxu0 0.0
        %277 = vmatprep.subr.mxu0 0.0
        %278 = vmatpush1.msra.mxu0 0.0
        %279 = vmatprep.subr.mxu0 0.0
        %280 = vmatpush1.msra.mxu0 0.0
        %281 = vmatprep.subr.mxu0 0.0
        %282 = vmatpush1.msra.mxu0 0.0
        %283 = vmatprep.subr.mxu0 0.0
        %284 = vmatpush1.msra.mxu0 0.0
        %285 = vmatprep.subr.mxu0 0.0
        %286 = vmatpush1.msra.mxu0 0.0
        %287 = vmatprep.subr.mxu0 0.0
        %288 = vmatpush1.msra.mxu0 0.0
        %289 = vmatprep.subr.mxu0 0.0
        %290 = vmatpush1.msra.mxu0 0.0
        %291 = vmatprep.subr.mxu0 0.0
        %292 = vmatpush1.msra.mxu0 0.0
        %293 = vmatprep.subr.mxu0 0.0
        %294 = vmatpush1.msra.mxu0 %v264
        %295 = vmatprep.subr.mxu0 0.0
        %296 = vmatpush1.msra.mxu0 %v263
        %297 = vmatprep.subr.mxu0 0.0
        %298 = vmatpush1.msra.mxu0 %v262
        %299 = vmatprep.subr.mxu0 0.0
        %300 = vmatpush1.msra.mxu0 %v261
        %301 = vmatprep.subr.mxu0 0.0
        %302 = vmatpush2.msra.mxu0 0.0
        %303 = vmatprep.subr.mxu0 0.0
        %304 = vmatpush2.msra.mxu0 0.0
        %305 = vmatprep.subr.mxu0 0.0
        %306 = vmatpush2.msra.mxu0 0.0
        %307 = vmatprep.subr.mxu0 0.0
        %308 = vmatpush2.msra.mxu0 0.0
        %309 = vmatprep.subr.mxu0 0.0
        %310 = vmatpush2.msra.mxu0 0.0
        %311 = vmatprep.subr.mxu0 0.0
        %312 = vmatpush2.msra.mxu0 0.0
        %313 = vmatprep.subr.mxu0 0.0
        %314 = vmatpush2.msra.mxu0 0.0
        %315 = vmatprep.subr.mxu0 0.0
        %316 = vmatpush2.msra.mxu0 0.0
        %317 = vmatprep.subr.mxu0 0.0
        %318 = vmatpush2.msra.mxu0 0.0
        %319 = vmatprep.subr.mxu0 0.0
        %320 = vmatpush2.msra.mxu0 0.0
        %321 = vmatprep.subr.mxu0 0.0
        %322 = vmatpush2.msra.mxu0 0.0
        %323 = vmatprep.subr.mxu0 0.0
        %324 = vmatpush2.msra.mxu0 0.0
        %325 = vmatprep.subr.mxu0 0.0
        %326 = vmatpush2.msra.mxu0 0.0
        %327 = vmatprep.subr.mxu0 0.0
        %328 = vmatpush2.msra.mxu0 0.0
        %329 = vmatprep.subr.mxu0 0.0
        %330 = vmatpush2.msra.mxu0 0.0
        %331 = vmatprep.subr.mxu0 0.0
        %332 = vmatpush2.msra.mxu0 0.0
        %333 = vmatprep.mubr.f32.mxu0 0.0
        %334 = vmatmul.mubr.f32.gmra.mxu0 %v267
        %v335 = vpop.f32.mrf.mxu0
        %v336 = vadd.f32 0.0, %v335
        %v337 = vpop.f32.mrf.mxu0
        %338 = vdwg.mxu0
        %340 = vrot.lane.b32.xlu0 %v336, 124
        %v341 = vpop.permute.xlu0 %340
        %343 = vrot.lane.b32.xlu0 %v336, 120
        %v344 = vpop.permute.xlu0 %343
        %346 = vrot.lane.b32.xlu0 %v336, 116
        %v347 = vpop.permute.xlu0 %346
        %349 = vrot.lane.b32.xlu0 %v336, 112
        %v350 = vpop.permute.xlu0 %349
        %352 = vrot.lane.b32.xlu0 %v336, 108
        %v353 = vpop.permute.xlu0 %352
        %355 = vrot.lane.b32.xlu0 %v336, 104
        %v356 = vpop.permute.xlu0 %355
        %358 = vrot.lane.b32.xlu0 %v336, 100
        %v359 = vpop.permute.xlu0 %358
        %361 = vrot.lane.b32.xlu0 %v336, 96
        %v362 = vpop.permute.xlu0 %361
        %364 = vrot.lane.b32.xlu0 %v336, 92
        %v365 = vpop.permute.xlu0 %364
        %367 = vrot.lane.b32.xlu0 %v336, 88
        %v368 = vpop.permute.xlu0 %367
        %370 = vrot.lane.b32.xlu0 %v336, 84
        %v371 = vpop.permute.xlu0 %370
        %373 = vrot.lane.b32.xlu0 %v336, 80
        %v374 = vpop.permute.xlu0 %373
        %376 = vrot.lane.b32.xlu0 %v336, 76
        %v377 = vpop.permute.xlu0 %376
        %379 = vrot.lane.b32.xlu0 %v336, 72
        %v380 = vpop.permute.xlu0 %379
        %382 = vrot.lane.b32.xlu0 %v336, 68
        %v383 = vpop.permute.xlu0 %382
        %385 = vrot.lane.b32.xlu0 %v336, 64
        %v386 = vpop.permute.xlu0 %385
        %388 = vrot.lane.b32.xlu0 %v336, 60
        %v389 = vpop.permute.xlu0 %388
        %391 = vrot.lane.b32.xlu0 %v336, 56
        %v392 = vpop.permute.xlu0 %391
        %394 = vrot.lane.b32.xlu0 %v336, 52
        %v395 = vpop.permute.xlu0 %394
        %397 = vrot.lane.b32.xlu0 %v336, 48
        %v398 = vpop.permute.xlu0 %397
        %400 = vrot.lane.b32.xlu0 %v336, 44
        %v401 = vpop.permute.xlu0 %400
        %403 = vrot.lane.b32.xlu0 %v336, 40
        %v404 = vpop.permute.xlu0 %403
        %406 = vrot.lane.b32.xlu0 %v336, 36
        %v407 = vpop.permute.xlu0 %406
        %v409 = vcombine.low %v336, %v344
        %v410 = vcombine.high %v336, %v344
        %v412 = vunpack.c.l.s4 1983009808
        %v413 = vunpack.c.0.s8 %v412
        %v414 = vlaneseq
        %v415 = vshrl.u32 %v414, 7
        %v416 = vsub.s32 %v413, %v415
        %v417 = vrot.slane %v409, %v416
        %v419 = vunpack.c.l.s4 1983009808
        %v420 = vunpack.c.0.s8 %v419
        %v421 = vlaneseq
        %v422 = vshrl.u32 %v421, 7
        %v423 = vsub.s32 %v420, %v422
        %v424 = vrot.slane %v410, %v423
        %v425 = vcombine.low %v341, %v347
        %v426 = vcombine.high %v341, %v347
        %v428 = vunpack.c.l.s4 1983009808
        %v429 = vunpack.c.0.s8 %v428
        %v430 = vlaneseq
        %v431 = vshrl.u32 %v430, 7
        %v432 = vsub.s32 %v429, %v431
        %v433 = vrot.slane %v425, %v432
        %v435 = vunpack.c.l.s4 1983009808
        %v436 = vunpack.c.0.s8 %v435
        %v437 = vlaneseq
        %v438 = vshrl.u32 %v437, 7
        %v439 = vsub.s32 %v436, %v438
        %v440 = vrot.slane %v426, %v439
        %v441 = vcombine.low %v350, %v356
        %v442 = vcombine.high %v350, %v356
        %v444 = vunpack.c.l.s4 1983009808
        %v445 = vunpack.c.0.s8 %v444
        %v446 = vlaneseq
        %v447 = vshrl.u32 %v446, 7
        %v448 = vsub.s32 %v445, %v447
        %v449 = vrot.slane %v441, %v448
        %v451 = vunpack.c.l.s4 1983009808
        %v452 = vunpack.c.0.s8 %v451
        %v453 = vlaneseq
        %v454 = vshrl.u32 %v453, 7
        %v455 = vsub.s32 %v452, %v454
        %v456 = vrot.slane %v442, %v455
        %v457 = vcombine.low %v353, %v359
        %v458 = vcombine.high %v353, %v359
        %v460 = vunpack.c.l.s4 1983009808
        %v461 = vunpack.c.0.s8 %v460
        %v462 = vlaneseq
        %v463 = vshrl.u32 %v462, 7
        %v464 = vsub.s32 %v461, %v463
        %v465 = vrot.slane %v457, %v464
        %v467 = vunpack.c.l.s4 1983009808
        %v468 = vunpack.c.0.s8 %v467
        %v469 = vlaneseq
        %v470 = vshrl.u32 %v469, 7
        %v471 = vsub.s32 %v468, %v470
        %v472 = vrot.slane %v458, %v471
        %v473 = vcombine.low %v417, %v433
        %v474 = vcombine.high %v417, %v433
        %v476 = vunpack.c.l.s4 1934713408
        %v477 = vunpack.c.0.s8 %v476
        %v478 = vlaneseq
        %v479 = vshrl.u32 %v478, 7
        %v480 = vsub.s32 %v477, %v479
        %v481 = vrot.slane %v473, %v480
        %v483 = vunpack.c.l.s4 1934713408
        %v484 = vunpack.c.0.s8 %v483
        %v485 = vlaneseq
        %v486 = vshrl.u32 %v485, 7
        %v487 = vsub.s32 %v484, %v486
        %v488 = vrot.slane %v474, %v487
        %v489 = vcombine.low %v424, %v440
        %v490 = vcombine.high %v424, %v440
        %v492 = vunpack.c.l.s4 1934713408
        %v493 = vunpack.c.0.s8 %v492
        %v494 = vlaneseq
        %v495 = vshrl.u32 %v494, 7
        %v496 = vsub.s32 %v493, %v495
        %v497 = vrot.slane %v489, %v496
        %v499 = vunpack.c.l.s4 1934713408
        %v500 = vunpack.c.0.s8 %v499
        %v501 = vlaneseq
        %v502 = vshrl.u32 %v501, 7
        %v503 = vsub.s32 %v500, %v502
        %v504 = vrot.slane %v490, %v503
        %v505 = vcombine.low %v449, %v465
        %v506 = vcombine.high %v449, %v465
        %v508 = vunpack.c.l.s4 1934713408
        %v509 = vunpack.c.0.s8 %v508
        %v510 = vlaneseq
        %v511 = vshrl.u32 %v510, 7
        %v512 = vsub.s32 %v509, %v511
        %v513 = vrot.slane %v505, %v512
        %v515 = vunpack.c.l.s4 1934713408
        %v516 = vunpack.c.0.s8 %v515
        %v517 = vlaneseq
        %v518 = vshrl.u32 %v517, 7
        %v519 = vsub.s32 %v516, %v518
        %v520 = vrot.slane %v506, %v519
        %v521 = vcombine.low %v456, %v472
        %v522 = vcombine.high %v456, %v472
        %v524 = vunpack.c.l.s4 1934713408
        %v525 = vunpack.c.0.s8 %v524
        %v526 = vlaneseq
        %v527 = vshrl.u32 %v526, 7
        %v528 = vsub.s32 %v525, %v527
        %v529 = vrot.slane %v521, %v528
        %v531 = vunpack.c.l.s4 1934713408
        %v532 = vunpack.c.0.s8 %v531
        %v533 = vlaneseq
        %v534 = vshrl.u32 %v533, 7
        %v535 = vsub.s32 %v532, %v534
        %v536 = vrot.slane %v522, %v535
        %v537 = vcombine.low %v481, %v513
        %v538 = vcombine.high %v481, %v513
        %v539 = vcombine.low %v488, %v520
        %v540 = vcombine.high %v488, %v520
        %v541 = vcombine.low %v497, %v529
        %v542 = vcombine.high %v497, %v529
        %v543 = vcombine.low %v504, %v536
        %v544 = vcombine.high %v504, %v536
        %v545 = vcombine.low %v362, %v368
        %v546 = vcombine.high %v362, %v368
        %v548 = vunpack.c.l.s4 1983009808
        %v549 = vunpack.c.0.s8 %v548
        %v550 = vlaneseq
        %v551 = vshrl.u32 %v550, 7
        %v552 = vsub.s32 %v549, %v551
        %v553 = vrot.slane %v545, %v552
        %v555 = vunpack.c.l.s4 1983009808
        %v556 = vunpack.c.0.s8 %v555
        %v557 = vlaneseq
        %v558 = vshrl.u32 %v557, 7
        %v559 = vsub.s32 %v556, %v558
        %v560 = vrot.slane %v546, %v559
        %v561 = vcombine.low %v365, %v371
        %v562 = vcombine.high %v365, %v371
        %v564 = vunpack.c.l.s4 1983009808
        %v565 = vunpack.c.0.s8 %v564
        %v566 = vlaneseq
        %v567 = vshrl.u32 %v566, 7
        %v568 = vsub.s32 %v565, %v567
        %v569 = vrot.slane %v561, %v568
        %v571 = vunpack.c.l.s4 1983009808
        %v572 = vunpack.c.0.s8 %v571
        %v573 = vlaneseq
        %v574 = vshrl.u32 %v573, 7
        %v575 = vsub.s32 %v572, %v574
        %v576 = vrot.slane %v562, %v575
        %v577 = vcombine.low %v374, %v380
        %v578 = vcombine.high %v374, %v380
        %v580 = vunpack.c.l.s4 1983009808
        %v581 = vunpack.c.0.s8 %v580
        %v582 = vlaneseq
        %v583 = vshrl.u32 %v582, 7
        %v584 = vsub.s32 %v581, %v583
        %v585 = vrot.slane %v577, %v584
        %v587 = vunpack.c.l.s4 1983009808
        %v588 = vunpack.c.0.s8 %v587
        %v589 = vlaneseq
        %v590 = vshrl.u32 %v589, 7
        %v591 = vsub.s32 %v588, %v590
        %v592 = vrot.slane %v578, %v591
        %v593 = vcombine.low %v377, %v383
        %v594 = vcombine.high %v377, %v383
        %v596 = vunpack.c.l.s4 1983009808
        %v597 = vunpack.c.0.s8 %v596
        %v598 = vlaneseq
        %v599 = vshrl.u32 %v598, 7
        %v600 = vsub.s32 %v597, %v599
        %v601 = vrot.slane %v593, %v600
        %v603 = vunpack.c.l.s4 1983009808
        %v604 = vunpack.c.0.s8 %v603
        %v605 = vlaneseq
        %v606 = vshrl.u32 %v605, 7
        %v607 = vsub.s32 %v604, %v606
        %v608 = vrot.slane %v594, %v607
        %v609 = vcombine.low %v553, %v569
        %v610 = vcombine.high %v553, %v569
        %v612 = vunpack.c.l.s4 1934713408
        %v613 = vunpack.c.0.s8 %v612
        %v614 = vlaneseq
        %v615 = vshrl.u32 %v614, 7
        %v616 = vsub.s32 %v613, %v615
        %v617 = vrot.slane %v609, %v616
        %v619 = vunpack.c.l.s4 1934713408
        %v620 = vunpack.c.0.s8 %v619
        %v621 = vlaneseq
        %v622 = vshrl.u32 %v621, 7
        %v623 = vsub.s32 %v620, %v622
        %v624 = vrot.slane %v610, %v623
        %v625 = vcombine.low %v560, %v576
        %v626 = vcombine.high %v560, %v576
        %v628 = vunpack.c.l.s4 1934713408
        %v629 = vunpack.c.0.s8 %v628
        %v630 = vlaneseq
        %v631 = vshrl.u32 %v630, 7
        %v632 = vsub.s32 %v629, %v631
        %v633 = vrot.slane %v625, %v632
        %v635 = vunpack.c.l.s4 1934713408
        %v636 = vunpack.c.0.s8 %v635
        %v637 = vlaneseq
        %v638 = vshrl.u32 %v637, 7
        %v639 = vsub.s32 %v636, %v638
        %v640 = vrot.slane %v626, %v639
        %v641 = vcombine.low %v585, %v601
        %v642 = vcombine.high %v585, %v601
        %v644 = vunpack.c.l.s4 1934713408
        %v645 = vunpack.c.0.s8 %v644
        %v646 = vlaneseq
        %v647 = vshrl.u32 %v646, 7
        %v648 = vsub.s32 %v645, %v647
        %v649 = vrot.slane %v641, %v648
        %v651 = vunpack.c.l.s4 1934713408
        %v652 = vunpack.c.0.s8 %v651
        %v653 = vlaneseq
        %v654 = vshrl.u32 %v653, 7
        %v655 = vsub.s32 %v652, %v654
        %v656 = vrot.slane %v642, %v655
        %v657 = vcombine.low %v592, %v608
        %v658 = vcombine.high %v592, %v608
        %v660 = vunpack.c.l.s4 1934713408
        %v661 = vunpack.c.0.s8 %v660
        %v662 = vlaneseq
        %v663 = vshrl.u32 %v662, 7
        %v664 = vsub.s32 %v661, %v663
        %v665 = vrot.slane %v657, %v664
        %v667 = vunpack.c.l.s4 1934713408
        %v668 = vunpack.c.0.s8 %v667
        %v669 = vlaneseq
        %v670 = vshrl.u32 %v669, 7
        %v671 = vsub.s32 %v668, %v670
        %v672 = vrot.slane %v658, %v671
        %v673 = vcombine.low %v617, %v649
        %v674 = vcombine.high %v617, %v649
        %v675 = vcombine.low %v624, %v656
        %v676 = vcombine.high %v624, %v656
        %v677 = vcombine.low %v633, %v665
        %v678 = vcombine.high %v633, %v665
        %v679 = vcombine.low %v640, %v672
        %v680 = vcombine.high %v640, %v672
        %v681 = vcombine.low %v386, %v392
        %v682 = vcombine.high %v386, %v392
        %v684 = vunpack.c.l.s4 1983009808
        %v685 = vunpack.c.0.s8 %v684
        %v686 = vlaneseq
        %v687 = vshrl.u32 %v686, 7
        %v688 = vsub.s32 %v685, %v687
        %v689 = vrot.slane %v681, %v688
        %v691 = vunpack.c.l.s4 1983009808
        %v692 = vunpack.c.0.s8 %v691
        %v693 = vlaneseq
        %v694 = vshrl.u32 %v693, 7
        %v695 = vsub.s32 %v692, %v694
        %v696 = vrot.slane %v682, %v695
        %v697 = vcombine.low %v389, %v395
        %v698 = vcombine.high %v389, %v395
        %v700 = vunpack.c.l.s4 1983009808
        %v701 = vunpack.c.0.s8 %v700
        %v702 = vlaneseq
        %v703 = vshrl.u32 %v702, 7
        %v704 = vsub.s32 %v701, %v703
        %v705 = vrot.slane %v697, %v704
        %v707 = vunpack.c.l.s4 1983009808
        %v708 = vunpack.c.0.s8 %v707
        %v709 = vlaneseq
        %v710 = vshrl.u32 %v709, 7
        %v711 = vsub.s32 %v708, %v710
        %v712 = vrot.slane %v698, %v711
        %v713 = vcombine.low %v398, %v404
        %v714 = vcombine.high %v398, %v404
        %v716 = vunpack.c.l.s4 1983009808
        %v717 = vunpack.c.0.s8 %v716
        %v718 = vlaneseq
        %v719 = vshrl.u32 %v718, 7
        %v720 = vsub.s32 %v717, %v719
        %v721 = vrot.slane %v713, %v720
        %v723 = vunpack.c.l.s4 1983009808
        %v724 = vunpack.c.0.s8 %v723
        %v725 = vlaneseq
        %v726 = vshrl.u32 %v725, 7
        %v727 = vsub.s32 %v724, %v726
        %v728 = vrot.slane %v714, %v727
        %v729 = vcombine.low %v401, %v407
        %v730 = vcombine.high %v401, %v407
        %v732 = vunpack.c.l.s4 1983009808
        %v733 = vunpack.c.0.s8 %v732
        %v734 = vlaneseq
        %v735 = vshrl.u32 %v734, 7
        %v736 = vsub.s32 %v733, %v735
        %v737 = vrot.slane %v729, %v736
        %v739 = vunpack.c.l.s4 1983009808
        %v740 = vunpack.c.0.s8 %v739
        %v741 = vlaneseq
        %v742 = vshrl.u32 %v741, 7
        %v743 = vsub.s32 %v740, %v742
        %v744 = vrot.slane %v730, %v743
        %v745 = vcombine.low %v689, %v705
        %v746 = vcombine.high %v689, %v705
        %v748 = vunpack.c.l.s4 1934713408
        %v749 = vunpack.c.0.s8 %v748
        %v750 = vlaneseq
        %v751 = vshrl.u32 %v750, 7
        %v752 = vsub.s32 %v749, %v751
        %v753 = vrot.slane %v745, %v752
        %v755 = vunpack.c.l.s4 1934713408
        %v756 = vunpack.c.0.s8 %v755
        %v757 = vlaneseq
        %v758 = vshrl.u32 %v757, 7
        %v759 = vsub.s32 %v756, %v758
        %v760 = vrot.slane %v746, %v759
        %v761 = vcombine.low %v696, %v712
        %v762 = vcombine.high %v696, %v712
        %v764 = vunpack.c.l.s4 1934713408
        %v765 = vunpack.c.0.s8 %v764
        %v766 = vlaneseq
        %v767 = vshrl.u32 %v766, 7
        %v768 = vsub.s32 %v765, %v767
        %v769 = vrot.slane %v761, %v768
        %v771 = vunpack.c.l.s4 1934713408
        %v772 = vunpack.c.0.s8 %v771
        %v773 = vlaneseq
        %v774 = vshrl.u32 %v773, 7
        %v775 = vsub.s32 %v772, %v774
        %v776 = vrot.slane %v762, %v775
        %v777 = vcombine.low %v721, %v737
        %v778 = vcombine.high %v721, %v737
        %v780 = vunpack.c.l.s4 1934713408
        %v781 = vunpack.c.0.s8 %v780
        %v782 = vlaneseq
        %v783 = vshrl.u32 %v782, 7
        %v784 = vsub.s32 %v781, %v783
        %v785 = vrot.slane %v777, %v784
        %v787 = vunpack.c.l.s4 1934713408
        %v788 = vunpack.c.0.s8 %v787
        %v789 = vlaneseq
        %v790 = vshrl.u32 %v789, 7
        %v791 = vsub.s32 %v788, %v790
        %v792 = vrot.slane %v778, %v791
        %v793 = vcombine.low %v728, %v744
        %v794 = vcombine.high %v728, %v744
        %v796 = vunpack.c.l.s4 1934713408
        %v797 = vunpack.c.0.s8 %v796
        %v798 = vlaneseq
        %v799 = vshrl.u32 %v798, 7
        %v800 = vsub.s32 %v797, %v799
        %v801 = vrot.slane %v793, %v800
        %v803 = vunpack.c.l.s4 1934713408
        %v804 = vunpack.c.0.s8 %v803
        %v805 = vlaneseq
        %v806 = vshrl.u32 %v805, 7
        %v807 = vsub.s32 %v804, %v806
        %v808 = vrot.slane %v794, %v807
        %v809 = vcombine.low %v753, %v785
        %v810 = vcombine.high %v753, %v785
        %v811 = vcombine.low %v760, %v792
        %v812 = vcombine.high %v760, %v792
        %v813 = vcombine.low %v769, %v801
        %v814 = vcombine.high %v769, %v801
        %v815 = vcombine.low %v776, %v808
        %v816 = vcombine.high %v776, %v808
        %v817 = vcombine.low %v537, %v539
        %v818 = vcombine.high %v537, %v539
        %v820 = vunpack.c.l.s4 1983009808
        %v821 = vunpack.c.0.s8 %v820
        %v822 = vlaneseq
        %v823 = vshrl.u32 %v822, 7
        %v824 = vsub.s32 %v821, %v823
        %v825 = vrot.slane %v817, %v824
        %v827 = vunpack.c.l.s4 1983009808
        %v828 = vunpack.c.0.s8 %v827
        %v829 = vlaneseq
        %v830 = vshrl.u32 %v829, 7
        %v831 = vsub.s32 %v828, %v830
        %v832 = vrot.slane %v818, %v831
        %v833 = vcombine.low %v538, %v540
        %v834 = vcombine.high %v538, %v540
        %v836 = vunpack.c.l.s4 1983009808
        %v837 = vunpack.c.0.s8 %v836
        %v838 = vlaneseq
        %v839 = vshrl.u32 %v838, 7
        %v840 = vsub.s32 %v837, %v839
        %v841 = vrot.slane %v833, %v840
        %v843 = vunpack.c.l.s4 1983009808
        %v844 = vunpack.c.0.s8 %v843
        %v845 = vlaneseq
        %v846 = vshrl.u32 %v845, 7
        %v847 = vsub.s32 %v844, %v846
        %v848 = vrot.slane %v834, %v847
        %v849 = vcombine.low %v541, %v543
        %v850 = vcombine.high %v541, %v543
        %v852 = vunpack.c.l.s4 1983009808
        %v853 = vunpack.c.0.s8 %v852
        %v854 = vlaneseq
        %v855 = vshrl.u32 %v854, 7
        %v856 = vsub.s32 %v853, %v855
        %v857 = vrot.slane %v849, %v856
        %v859 = vunpack.c.l.s4 1983009808
        %v860 = vunpack.c.0.s8 %v859
        %v861 = vlaneseq
        %v862 = vshrl.u32 %v861, 7
        %v863 = vsub.s32 %v860, %v862
        %v864 = vrot.slane %v850, %v863
        %v865 = vcombine.low %v542, %v544
        %v866 = vcombine.high %v542, %v544
        %v868 = vunpack.c.l.s4 1983009808
        %v869 = vunpack.c.0.s8 %v868
        %v870 = vlaneseq
        %v871 = vshrl.u32 %v870, 7
        %v872 = vsub.s32 %v869, %v871
        %v873 = vrot.slane %v865, %v872
        %v875 = vunpack.c.l.s4 1983009808
        %v876 = vunpack.c.0.s8 %v875
        %v877 = vlaneseq
        %v878 = vshrl.u32 %v877, 7
        %v879 = vsub.s32 %v876, %v878
        %v880 = vrot.slane %v866, %v879
        %v881 = vcombine.low %v825, %v841
        %v882 = vcombine.high %v825, %v841
        %v884 = vunpack.c.l.s4 1934713408
        %v885 = vunpack.c.0.s8 %v884
        %v886 = vlaneseq
        %v887 = vshrl.u32 %v886, 7
        %v888 = vsub.s32 %v885, %v887
        %v889 = vrot.slane %v881, %v888
        %v891 = vunpack.c.l.s4 1934713408
        %v892 = vunpack.c.0.s8 %v891
        %v893 = vlaneseq
        %v894 = vshrl.u32 %v893, 7
        %v895 = vsub.s32 %v892, %v894
        %v896 = vrot.slane %v882, %v895
        %v897 = vcombine.low %v832, %v848
        %v898 = vcombine.high %v832, %v848
        %v900 = vunpack.c.l.s4 1934713408
        %v901 = vunpack.c.0.s8 %v900
        %v902 = vlaneseq
        %v903 = vshrl.u32 %v902, 7
        %v904 = vsub.s32 %v901, %v903
        %v905 = vrot.slane %v897, %v904
        %v907 = vunpack.c.l.s4 1934713408
        %v908 = vunpack.c.0.s8 %v907
        %v909 = vlaneseq
        %v910 = vshrl.u32 %v909, 7
        %v911 = vsub.s32 %v908, %v910
        %v912 = vrot.slane %v898, %v911
        %v913 = vcombine.low %v857, %v873
        %v914 = vcombine.high %v857, %v873
        %v916 = vunpack.c.l.s4 1934713408
        %v917 = vunpack.c.0.s8 %v916
        %v918 = vlaneseq
        %v919 = vshrl.u32 %v918, 7
        %v920 = vsub.s32 %v917, %v919
        %v921 = vrot.slane %v913, %v920
        %v923 = vunpack.c.l.s4 1934713408
        %v924 = vunpack.c.0.s8 %v923
        %v925 = vlaneseq
        %v926 = vshrl.u32 %v925, 7
        %v927 = vsub.s32 %v924, %v926
        %v928 = vrot.slane %v914, %v927
        %v929 = vcombine.low %v864, %v880
        %v930 = vcombine.high %v864, %v880
        %v932 = vunpack.c.l.s4 1934713408
        %v933 = vunpack.c.0.s8 %v932
        %v934 = vlaneseq
        %v935 = vshrl.u32 %v934, 7
        %v936 = vsub.s32 %v933, %v935
        %v937 = vrot.slane %v929, %v936
        %v939 = vunpack.c.l.s4 1934713408
        %v940 = vunpack.c.0.s8 %v939
        %v941 = vlaneseq
        %v942 = vshrl.u32 %v941, 7
        %v943 = vsub.s32 %v940, %v942
        %v944 = vrot.slane %v930, %v943
        %v945 = vcombine.low %v889, %v921
        %v946 = vcombine.high %v889, %v921
        %v947 = vcombine.low %v896, %v928
        %v948 = vcombine.high %v896, %v928
        %v949 = vcombine.low %v905, %v937
        %v950 = vcombine.high %v905, %v937
        %v951 = vcombine.low %v912, %v944
        %v952 = vcombine.high %v912, %v944
        %v953 = vcombine.low %v673, %v675
        %v954 = vcombine.high %v673, %v675
        %v956 = vunpack.c.l.s4 1983009808
        %v957 = vunpack.c.0.s8 %v956
        %v958 = vlaneseq
        %v959 = vshrl.u32 %v958, 7
        %v960 = vsub.s32 %v957, %v959
        %v961 = vrot.slane %v953, %v960
        %v963 = vunpack.c.l.s4 1983009808
        %v964 = vunpack.c.0.s8 %v963
        %v965 = vlaneseq
        %v966 = vshrl.u32 %v965, 7
        %v967 = vsub.s32 %v964, %v966
        %v968 = vrot.slane %v954, %v967
        %v969 = vcombine.low %v674, %v676
        %v970 = vcombine.high %v674, %v676
        %v972 = vunpack.c.l.s4 1983009808
        %v973 = vunpack.c.0.s8 %v972
        %v974 = vlaneseq
        %v975 = vshrl.u32 %v974, 7
        %v976 = vsub.s32 %v973, %v975
        %v977 = vrot.slane %v969, %v976
        %v979 = vunpack.c.l.s4 1983009808
        %v980 = vunpack.c.0.s8 %v979
        %v981 = vlaneseq
        %v982 = vshrl.u32 %v981, 7
        %v983 = vsub.s32 %v980, %v982
        %v984 = vrot.slane %v970, %v983
        %v985 = vcombine.low %v677, %v679
        %v986 = vcombine.high %v677, %v679
        %v988 = vunpack.c.l.s4 1983009808
        %v989 = vunpack.c.0.s8 %v988
        %v990 = vlaneseq
        %v991 = vshrl.u32 %v990, 7
        %v992 = vsub.s32 %v989, %v991
        %v993 = vrot.slane %v985, %v992
        %v995 = vunpack.c.l.s4 1983009808
        %v996 = vunpack.c.0.s8 %v995
        %v997 = vlaneseq
        %v998 = vshrl.u32 %v997, 7
        %v999 = vsub.s32 %v996, %v998
        %v1000 = vrot.slane %v986, %v999
        %v1001 = vcombine.low %v678, %v680
        %v1002 = vcombine.high %v678, %v680
        %v1004 = vunpack.c.l.s4 1983009808
        %v1005 = vunpack.c.0.s8 %v1004
        %v1006 = vlaneseq
        %v1007 = vshrl.u32 %v1006, 7
        %v1008 = vsub.s32 %v1005, %v1007
        %v1009 = vrot.slane %v1001, %v1008
        %v1011 = vunpack.c.l.s4 1983009808
        %v1012 = vunpack.c.0.s8 %v1011
        %v1013 = vlaneseq
        %v1014 = vshrl.u32 %v1013, 7
        %v1015 = vsub.s32 %v1012, %v1014
        %v1016 = vrot.slane %v1002, %v1015
        %v1017 = vcombine.low %v961, %v977
        %v1018 = vcombine.high %v961, %v977
        %v1020 = vunpack.c.l.s4 1934713408
        %v1021 = vunpack.c.0.s8 %v1020
        %v1022 = vlaneseq
        %v1023 = vshrl.u32 %v1022, 7
        %v1024 = vsub.s32 %v1021, %v1023
        %v1025 = vrot.slane %v1017, %v1024
        %v1027 = vunpack.c.l.s4 1934713408
        %v1028 = vunpack.c.0.s8 %v1027
        %v1029 = vlaneseq
        %v1030 = vshrl.u32 %v1029, 7
        %v1031 = vsub.s32 %v1028, %v1030
        %v1032 = vrot.slane %v1018, %v1031
        %v1033 = vcombine.low %v968, %v984
        %v1034 = vcombine.high %v968, %v984
        %v1036 = vunpack.c.l.s4 1934713408
        %v1037 = vunpack.c.0.s8 %v1036
        %v1038 = vlaneseq
        %v1039 = vshrl.u32 %v1038, 7
        %v1040 = vsub.s32 %v1037, %v1039
        %v1041 = vrot.slane %v1033, %v1040
        %v1043 = vunpack.c.l.s4 1934713408
        %v1044 = vunpack.c.0.s8 %v1043
        %v1045 = vlaneseq
        %v1046 = vshrl.u32 %v1045, 7
        %v1047 = vsub.s32 %v1044, %v1046
        %v1048 = vrot.slane %v1034, %v1047
        %v1049 = vcombine.low %v993, %v1009
        %v1050 = vcombine.high %v993, %v1009
        %v1052 = vunpack.c.l.s4 1934713408
        %v1053 = vunpack.c.0.s8 %v1052
        %v1054 = vlaneseq
        %v1055 = vshrl.u32 %v1054, 7
        %v1056 = vsub.s32 %v1053, %v1055
        %v1057 = vrot.slane %v1049, %v1056
        %v1059 = vunpack.c.l.s4 1934713408
        %v1060 = vunpack.c.0.s8 %v1059
        %v1061 = vlaneseq
        %v1062 = vshrl.u32 %v1061, 7
        %v1063 = vsub.s32 %v1060, %v1062
        %v1064 = vrot.slane %v1050, %v1063
        %v1065 = vcombine.low %v1000, %v1016
        %v1066 = vcombine.high %v1000, %v1016
        %v1068 = vunpack.c.l.s4 1934713408
        %v1069 = vunpack.c.0.s8 %v1068
        %v1070 = vlaneseq
        %v1071 = vshrl.u32 %v1070, 7
        %v1072 = vsub.s32 %v1069, %v1071
        %v1073 = vrot.slane %v1065, %v1072
        %v1075 = vunpack.c.l.s4 1934713408
        %v1076 = vunpack.c.0.s8 %v1075
        %v1077 = vlaneseq
        %v1078 = vshrl.u32 %v1077, 7
        %v1079 = vsub.s32 %v1076, %v1078
        %v1080 = vrot.slane %v1066, %v1079
        %v1081 = vcombine.low %v1025, %v1057
        %v1082 = vcombine.high %v1025, %v1057
        %v1083 = vcombine.low %v1032, %v1064
        %v1084 = vcombine.high %v1032, %v1064
        %v1085 = vcombine.low %v1041, %v1073
        %v1086 = vcombine.high %v1041, %v1073
        %v1087 = vcombine.low %v1048, %v1080
        %v1088 = vcombine.high %v1048, %v1080
        %v1089 = vcombine.low %v809, %v811
        %v1090 = vcombine.high %v809, %v811
        %v1092 = vunpack.c.l.s4 1983009808
        %v1093 = vunpack.c.0.s8 %v1092
        %v1094 = vlaneseq
        %v1095 = vshrl.u32 %v1094, 7
        %v1096 = vsub.s32 %v1093, %v1095
        %v1097 = vrot.slane %v1089, %v1096
        %v1099 = vunpack.c.l.s4 1983009808
        %v1100 = vunpack.c.0.s8 %v1099
        %v1101 = vlaneseq
        %v1102 = vshrl.u32 %v1101, 7
        %v1103 = vsub.s32 %v1100, %v1102
        %v1104 = vrot.slane %v1090, %v1103
        %v1105 = vcombine.low %v810, %v812
        %v1106 = vcombine.high %v810, %v812
        %v1108 = vunpack.c.l.s4 1983009808
        %v1109 = vunpack.c.0.s8 %v1108
        %v1110 = vlaneseq
        %v1111 = vshrl.u32 %v1110, 7
        %v1112 = vsub.s32 %v1109, %v1111
        %v1113 = vrot.slane %v1105, %v1112
        %v1115 = vunpack.c.l.s4 1983009808
        %v1116 = vunpack.c.0.s8 %v1115
        %v1117 = vlaneseq
        %v1118 = vshrl.u32 %v1117, 7
        %v1119 = vsub.s32 %v1116, %v1118
        %v1120 = vrot.slane %v1106, %v1119
        %v1121 = vcombine.low %v813, %v815
        %v1122 = vcombine.high %v813, %v815
        %v1124 = vunpack.c.l.s4 1983009808
        %v1125 = vunpack.c.0.s8 %v1124
        %v1126 = vlaneseq
        %v1127 = vshrl.u32 %v1126, 7
        %v1128 = vsub.s32 %v1125, %v1127
        %v1129 = vrot.slane %v1121, %v1128
        %v1131 = vunpack.c.l.s4 1983009808
        %v1132 = vunpack.c.0.s8 %v1131
        %v1133 = vlaneseq
        %v1134 = vshrl.u32 %v1133, 7
        %v1135 = vsub.s32 %v1132, %v1134
        %v1136 = vrot.slane %v1122, %v1135
        %v1137 = vcombine.low %v814, %v816
        %v1138 = vcombine.high %v814, %v816
        %v1140 = vunpack.c.l.s4 1983009808
        %v1141 = vunpack.c.0.s8 %v1140
        %v1142 = vlaneseq
        %v1143 = vshrl.u32 %v1142, 7
        %v1144 = vsub.s32 %v1141, %v1143
        %v1145 = vrot.slane %v1137, %v1144
        %v1147 = vunpack.c.l.s4 1983009808
        %v1148 = vunpack.c.0.s8 %v1147
        %v1149 = vlaneseq
        %v1150 = vshrl.u32 %v1149, 7
        %v1151 = vsub.s32 %v1148, %v1150
        %v1152 = vrot.slane %v1138, %v1151
        %v1153 = vcombine.low %v1097, %v1113
        %v1154 = vcombine.high %v1097, %v1113
        %v1156 = vunpack.c.l.s4 1934713408
        %v1157 = vunpack.c.0.s8 %v1156
        %v1158 = vlaneseq
        %v1159 = vshrl.u32 %v1158, 7
        %v1160 = vsub.s32 %v1157, %v1159
        %v1161 = vrot.slane %v1153, %v1160
        %v1163 = vunpack.c.l.s4 1934713408
        %v1164 = vunpack.c.0.s8 %v1163
        %v1165 = vlaneseq
        %v1166 = vshrl.u32 %v1165, 7
        %v1167 = vsub.s32 %v1164, %v1166
        %v1168 = vrot.slane %v1154, %v1167
        %v1169 = vcombine.low %v1104, %v1120
        %v1170 = vcombine.high %v1104, %v1120
        %v1172 = vunpack.c.l.s4 1934713408
        %v1173 = vunpack.c.0.s8 %v1172
        %v1174 = vlaneseq
        %v1175 = vshrl.u32 %v1174, 7
        %v1176 = vsub.s32 %v1173, %v1175
        %v1177 = vrot.slane %v1169, %v1176
        %v1179 = vunpack.c.l.s4 1934713408
        %v1180 = vunpack.c.0.s8 %v1179
        %v1181 = vlaneseq
        %v1182 = vshrl.u32 %v1181, 7
        %v1183 = vsub.s32 %v1180, %v1182
        %v1184 = vrot.slane %v1170, %v1183
        %v1185 = vcombine.low %v1129, %v1145
        %v1186 = vcombine.high %v1129, %v1145
        %v1188 = vunpack.c.l.s4 1934713408
        %v1189 = vunpack.c.0.s8 %v1188
        %v1190 = vlaneseq
        %v1191 = vshrl.u32 %v1190, 7
        %v1192 = vsub.s32 %v1189, %v1191
        %v1193 = vrot.slane %v1185, %v1192
        %v1195 = vunpack.c.l.s4 1934713408
        %v1196 = vunpack.c.0.s8 %v1195
        %v1197 = vlaneseq
        %v1198 = vshrl.u32 %v1197, 7
        %v1199 = vsub.s32 %v1196, %v1198
        %v1200 = vrot.slane %v1186, %v1199
        %v1201 = vcombine.low %v1136, %v1152
        %v1202 = vcombine.high %v1136, %v1152
        %v1204 = vunpack.c.l.s4 1934713408
        %v1205 = vunpack.c.0.s8 %v1204
        %v1206 = vlaneseq
        %v1207 = vshrl.u32 %v1206, 7
        %v1208 = vsub.s32 %v1205, %v1207
        %v1209 = vrot.slane %v1201, %v1208
        %v1211 = vunpack.c.l.s4 1934713408
        %v1212 = vunpack.c.0.s8 %v1211
        %v1213 = vlaneseq
        %v1214 = vshrl.u32 %v1213, 7
        %v1215 = vsub.s32 %v1212, %v1214
        %v1216 = vrot.slane %v1202, %v1215
        %v1217 = vcombine.low %v1161, %v1193
        %v1218 = vcombine.high %v1161, %v1193
        %v1219 = vcombine.low %v1168, %v1200
        %v1220 = vcombine.high %v1168, %v1200
        %v1221 = vcombine.low %v1177, %v1209
        %v1222 = vcombine.high %v1177, %v1209
        %v1223 = vcombine.low %v1184, %v1216
        %v1224 = vcombine.high %v1184, %v1216
        %vm1225 = vcmask 31744
        %v1227 = vsel %vm1225, %v945, 0
        %v1230 = vsel %vm1225, %v1081, 0
        %1232 = vmatprep.subr.mxu0 0.0
        %1233 = vmatpush1.xpose.msra.mxu0 0.0
        %1234 = vmatprep.subr.mxu0 0.0
        %1235 = vmatpush1.xpose.msra.mxu0 0.0
        %1236 = vmatprep.subr.mxu0 0.0
        %1237 = vmatpush1.xpose.msra.mxu0 0.0
        %1238 = vmatprep.subr.mxu0 0.0
        %1239 = vmatpush1.xpose.msra.mxu0 0.0
        %1240 = vmatprep.subr.mxu0 0.0
        %1241 = vmatpush1.xpose.msra.mxu0 0.0
        %1242 = vmatprep.subr.mxu0 0.0
        %1243 = vmatpush1.xpose.msra.mxu0 0.0
        %1244 = vmatprep.subr.mxu0 0.0
        %1245 = vmatpush1.xpose.msra.mxu0 0.0
        %1246 = vmatprep.subr.mxu0 0.0
        %1247 = vmatpush1.xpose.msra.mxu0 0.0
        %1248 = vmatprep.subr.mxu0 0.0
        %1249 = vmatpush1.xpose.msra.mxu0 0.0
        %1250 = vmatprep.subr.mxu0 0.0
        %1251 = vmatpush1.xpose.msra.mxu0 0.0
        %1252 = vmatprep.subr.mxu0 0.0
        %1253 = vmatpush1.xpose.msra.mxu0 0.0
        %1254 = vmatprep.subr.mxu0 0.0
        %1255 = vmatpush1.xpose.msra.mxu0 0.0
        %1256 = vmatprep.subr.mxu0 0.0
        %1257 = vmatpush1.xpose.msra.mxu0 0.0
        %1258 = vmatprep.subr.mxu0 0.0
        %1259 = vmatpush1.xpose.msra.mxu0 0.0
        %1260 = vmatprep.subr.mxu0 0.0
        %1261 = vmatpush1.xpose.msra.mxu0 0.0
        %1262 = vmatprep.subr.mxu0 0.0
        %1263 = vmatpush1.xpose.msra.mxu0 %v1230
        %1264 = vmatprep.subr.mxu0 0.0
        %1265 = vmatpush2.xpose.msra.mxu0 0.0
        %1266 = vmatprep.subr.mxu0 0.0
        %1267 = vmatpush2.xpose.msra.mxu0 0.0
        %1268 = vmatprep.subr.mxu0 0.0
        %1269 = vmatpush2.xpose.msra.mxu0 0.0
        %1270 = vmatprep.subr.mxu0 0.0
        %1271 = vmatpush2.xpose.msra.mxu0 0.0
        %1272 = vmatprep.subr.mxu0 0.0
        %1273 = vmatpush2.xpose.msra.mxu0 0.0
        %1274 = vmatprep.subr.mxu0 0.0
        %1275 = vmatpush2.xpose.msra.mxu0 0.0
        %1276 = vmatprep.subr.mxu0 0.0
        %1277 = vmatpush2.xpose.msra.mxu0 0.0
        %1278 = vmatprep.subr.mxu0 0.0
        %1279 = vmatpush2.xpose.msra.mxu0 0.0
        %1280 = vmatprep.subr.mxu0 0.0
        %1281 = vmatpush2.xpose.msra.mxu0 0.0
        %1282 = vmatprep.subr.mxu0 0.0
        %1283 = vmatpush2.xpose.msra.mxu0 0.0
        %1284 = vmatprep.subr.mxu0 0.0
        %1285 = vmatpush2.xpose.msra.mxu0 0.0
        %1286 = vmatprep.subr.mxu0 0.0
        %1287 = vmatpush2.xpose.msra.mxu0 0.0
        %1288 = vmatprep.subr.mxu0 0.0
        %1289 = vmatpush2.xpose.msra.mxu0 0.0
        %1290 = vmatprep.subr.mxu0 0.0
        %1291 = vmatpush2.xpose.msra.mxu0 0.0
        %1292 = vmatprep.subr.mxu0 0.0
        %1293 = vmatpush2.xpose.msra.mxu0 0.0
        %1294 = vmatprep.subr.mxu0 0.0
        %1295 = vmatpush2.xpose.msra.mxu0 0.0
        %1296 = vmatprep.mubr.f32.mxu0 0.0
        %1297 = vmatmul.mubr.f32.gmra.mxu0 %v1227
        %v1298 = vpop.f32.mrf.mxu0
        %v1299 = vadd.f32 0.0, %v1298
        %v1300 = vpop.f32.mrf.mxu0
        %1301 = vdwg.mxu0
        %v1303 = vsel %vm1225, %v946, 0
        %v1306 = vsel %vm1225, %v1082, 0
        %1308 = vmatprep.subr.mxu0 0.0
        %1309 = vmatpush1.xpose.msra.mxu0 0.0
        %1310 = vmatprep.subr.mxu0 0.0
        %1311 = vmatpush1.xpose.msra.mxu0 0.0
        %1312 = vmatprep.subr.mxu0 0.0
        %1313 = vmatpush1.xpose.msra.mxu0 0.0
        %1314 = vmatprep.subr.mxu0 0.0
        %1315 = vmatpush1.xpose.msra.mxu0 0.0
        %1316 = vmatprep.subr.mxu0 0.0
        %1317 = vmatpush1.xpose.msra.mxu0 0.0
        %1318 = vmatprep.subr.mxu0 0.0
        %1319 = vmatpush1.xpose.msra.mxu0 0.0
        %1320 = vmatprep.subr.mxu0 0.0
        %1321 = vmatpush1.xpose.msra.mxu0 0.0
        %1322 = vmatprep.subr.mxu0 0.0
        %1323 = vmatpush1.xpose.msra.mxu0 0.0
        %1324 = vmatprep.subr.mxu0 0.0
        %1325 = vmatpush1.xpose.msra.mxu0 0.0
        %1326 = vmatprep.subr.mxu0 0.0
        %1327 = vmatpush1.xpose.msra.mxu0 0.0
        %1328 = vmatprep.subr.mxu0 0.0
        %1329 = vmatpush1.xpose.msra.mxu0 0.0
        %1330 = vmatprep.subr.mxu0 0.0
        %1331 = vmatpush1.xpose.msra.mxu0 0.0
        %1332 = vmatprep.subr.mxu0 0.0
        %1333 = vmatpush1.xpose.msra.mxu0 0.0
        %1334 = vmatprep.subr.mxu0 0.0
        %1335 = vmatpush1.xpose.msra.mxu0 0.0
        %1336 = vmatprep.subr.mxu0 0.0
        %1337 = vmatpush1.xpose.msra.mxu0 0.0
        %1338 = vmatprep.subr.mxu0 0.0
        %1339 = vmatpush1.xpose.msra.mxu0 %v1306
        %1340 = vmatprep.subr.mxu0 0.0
        %1341 = vmatpush2.xpose.msra.mxu0 0.0
        %1342 = vmatprep.subr.mxu0 0.0
        %1343 = vmatpush2.xpose.msra.mxu0 0.0
        %1344 = vmatprep.subr.mxu0 0.0
        %1345 = vmatpush2.xpose.msra.mxu0 0.0
        %1346 = vmatprep.subr.mxu0 0.0
        %1347 = vmatpush2.xpose.msra.mxu0 0.0
        %1348 = vmatprep.subr.mxu0 0.0
        %1349 = vmatpush2.xpose.msra.mxu0 0.0
        %1350 = vmatprep.subr.mxu0 0.0
        %1351 = vmatpush2.xpose.msra.mxu0 0.0
        %1352 = vmatprep.subr.mxu0 0.0
        %1353 = vmatpush2.xpose.msra.mxu0 0.0
        %1354 = vmatprep.subr.mxu0 0.0
        %1355 = vmatpush2.xpose.msra.mxu0 0.0
        %1356 = vmatprep.subr.mxu0 0.0
        %1357 = vmatpush2.xpose.msra.mxu0 0.0
        %1358 = vmatprep.subr.mxu0 0.0
        %1359 = vmatpush2.xpose.msra.mxu0 0.0
        %1360 = vmatprep.subr.mxu0 0.0
        %1361 = vmatpush2.xpose.msra.mxu0 0.0
        %1362 = vmatprep.subr.mxu0 0.0
        %1363 = vmatpush2.xpose.msra.mxu0 0.0
        %1364 = vmatprep.subr.mxu0 0.0
        %1365 = vmatpush2.xpose.msra.mxu0 0.0
        %1366 = vmatprep.subr.mxu0 0.0
        %1367 = vmatpush2.xpose.msra.mxu0 0.0
        %1368 = vmatprep.subr.mxu0 0.0
        %1369 = vmatpush2.xpose.msra.mxu0 0.0
        %1370 = vmatprep.subr.mxu0 0.0
        %1371 = vmatpush2.xpose.msra.mxu0 0.0
        %1372 = vmatprep.mubr.f32.mxu0 0.0
        %1373 = vmatmul.mubr.f32.gmra.mxu0 %v1303
        %v1374 = vpop.f32.mrf.mxu0
        %v1375 = vadd.f32 0.0, %v1374
        %v1376 = vpop.f32.mrf.mxu0
        %1377 = vdwg.mxu0
        %v1379 = vsel %vm1225, %v947, 0
        %v1382 = vsel %vm1225, %v1083, 0
        %1384 = vmatprep.subr.mxu0 0.0
        %1385 = vmatpush1.xpose.msra.mxu0 0.0
        %1386 = vmatprep.subr.mxu0 0.0
        %1387 = vmatpush1.xpose.msra.mxu0 0.0
        %1388 = vmatprep.subr.mxu0 0.0
        %1389 = vmatpush1.xpose.msra.mxu0 0.0
        %1390 = vmatprep.subr.mxu0 0.0
        %1391 = vmatpush1.xpose.msra.mxu0 0.0
        %1392 = vmatprep.subr.mxu0 0.0
        %1393 = vmatpush1.xpose.msra.mxu0 0.0
        %1394 = vmatprep.subr.mxu0 0.0
        %1395 = vmatpush1.xpose.msra.mxu0 0.0
        %1396 = vmatprep.subr.mxu0 0.0
        %1397 = vmatpush1.xpose.msra.mxu0 0.0
        %1398 = vmatprep.subr.mxu0 0.0
        %1399 = vmatpush1.xpose.msra.mxu0 0.0
        %1400 = vmatprep.subr.mxu0 0.0
        %1401 = vmatpush1.xpose.msra.mxu0 0.0
        %1402 = vmatprep.subr.mxu0 0.0
        %1403 = vmatpush1.xpose.msra.mxu0 0.0
        %1404 = vmatprep.subr.mxu0 0.0
        %1405 = vmatpush1.xpose.msra.mxu0 0.0
        %1406 = vmatprep.subr.mxu0 0.0
        %1407 = vmatpush1.xpose.msra.mxu0 0.0
        %1408 = vmatprep.subr.mxu0 0.0
        %1409 = vmatpush1.xpose.msra.mxu0 0.0
        %1410 = vmatprep.subr.mxu0 0.0
        %1411 = vmatpush1.xpose.msra.mxu0 0.0
        %1412 = vmatprep.subr.mxu0 0.0
        %1413 = vmatpush1.xpose.msra.mxu0 0.0
        %1414 = vmatprep.subr.mxu0 0.0
        %1415 = vmatpush1.xpose.msra.mxu0 %v1382
        %1416 = vmatprep.subr.mxu0 0.0
        %1417 = vmatpush2.xpose.msra.mxu0 0.0
        %1418 = vmatprep.subr.mxu0 0.0
        %1419 = vmatpush2.xpose.msra.mxu0 0.0
        %1420 = vmatprep.subr.mxu0 0.0
        %1421 = vmatpush2.xpose.msra.mxu0 0.0
        %1422 = vmatprep.subr.mxu0 0.0
        %1423 = vmatpush2.xpose.msra.mxu0 0.0
        %1424 = vmatprep.subr.mxu0 0.0
        %1425 = vmatpush2.xpose.msra.mxu0 0.0
        %1426 = vmatprep.subr.mxu0 0.0
        %1427 = vmatpush2.xpose.msra.mxu0 0.0
        %1428 = vmatprep.subr.mxu0 0.0
        %1429 = vmatpush2.xpose.msra.mxu0 0.0
        %1430 = vmatprep.subr.mxu0 0.0
        %1431 = vmatpush2.xpose.msra.mxu0 0.0
        %1432 = vmatprep.subr.mxu0 0.0
        %1433 = vmatpush2.xpose.msra.mxu0 0.0
        %1434 = vmatprep.subr.mxu0 0.0
        %1435 = vmatpush2.xpose.msra.mxu0 0.0
        %1436 = vmatprep.subr.mxu0 0.0
        %1437 = vmatpush2.xpose.msra.mxu0 0.0
        %1438 = vmatprep.subr.mxu0 0.0
        %1439 = vmatpush2.xpose.msra.mxu0 0.0
        %1440 = vmatprep.subr.mxu0 0.0
        %1441 = vmatpush2.xpose.msra.mxu0 0.0
        %1442 = vmatprep.subr.mxu0 0.0
        %1443 = vmatpush2.xpose.msra.mxu0 0.0
        %1444 = vmatprep.subr.mxu0 0.0
        %1445 = vmatpush2.xpose.msra.mxu0 0.0
        %1446 = vmatprep.subr.mxu0 0.0
        %1447 = vmatpush2.xpose.msra.mxu0 0.0
        %1448 = vmatprep.mubr.f32.mxu0 0.0
        %1449 = vmatmul.mubr.f32.gmra.mxu0 %v1379
        %v1450 = vpop.f32.mrf.mxu0
        %v1451 = vadd.f32 0.0, %v1450
        %v1452 = vpop.f32.mrf.mxu0
        %1453 = vdwg.mxu0
        %v1455 = vsel %vm1225, %v948, 0
        %v1458 = vsel %vm1225, %v1084, 0
        %1460 = vmatprep.subr.mxu0 0.0
        %1461 = vmatpush1.xpose.msra.mxu0 0.0
        %1462 = vmatprep.subr.mxu0 0.0
        %1463 = vmatpush1.xpose.msra.mxu0 0.0
        %1464 = vmatprep.subr.mxu0 0.0
        %1465 = vmatpush1.xpose.msra.mxu0 0.0
        %1466 = vmatprep.subr.mxu0 0.0
        %1467 = vmatpush1.xpose.msra.mxu0 0.0
        %1468 = vmatprep.subr.mxu0 0.0
        %1469 = vmatpush1.xpose.msra.mxu0 0.0
        %1470 = vmatprep.subr.mxu0 0.0
        %1471 = vmatpush1.xpose.msra.mxu0 0.0
        %1472 = vmatprep.subr.mxu0 0.0
        %1473 = vmatpush1.xpose.msra.mxu0 0.0
        %1474 = vmatprep.subr.mxu0 0.0
        %1475 = vmatpush1.xpose.msra.mxu0 0.0
        %1476 = vmatprep.subr.mxu0 0.0
        %1477 = vmatpush1.xpose.msra.mxu0 0.0
        %1478 = vmatprep.subr.mxu0 0.0
        %1479 = vmatpush1.xpose.msra.mxu0 0.0
        %1480 = vmatprep.subr.mxu0 0.0
        %1481 = vmatpush1.xpose.msra.mxu0 0.0
        %1482 = vmatprep.subr.mxu0 0.0
        %1483 = vmatpush1.xpose.msra.mxu0 0.0
        %1484 = vmatprep.subr.mxu0 0.0
        %1485 = vmatpush1.xpose.msra.mxu0 0.0
        %1486 = vmatprep.subr.mxu0 0.0
        %1487 = vmatpush1.xpose.msra.mxu0 0.0
        %1488 = vmatprep.subr.mxu0 0.0
        %1489 = vmatpush1.xpose.msra.mxu0 0.0
        %1490 = vmatprep.subr.mxu0 0.0
        %1491 = vmatpush1.xpose.msra.mxu0 %v1458
        %1492 = vmatprep.subr.mxu0 0.0
        %1493 = vmatpush2.xpose.msra.mxu0 0.0
        %1494 = vmatprep.subr.mxu0 0.0
        %1495 = vmatpush2.xpose.msra.mxu0 0.0
        %1496 = vmatprep.subr.mxu0 0.0
        %1497 = vmatpush2.xpose.msra.mxu0 0.0
        %1498 = vmatprep.subr.mxu0 0.0
        %1499 = vmatpush2.xpose.msra.mxu0 0.0
        %1500 = vmatprep.subr.mxu0 0.0
        %1501 = vmatpush2.xpose.msra.mxu0 0.0
        %1502 = vmatprep.subr.mxu0 0.0
        %1503 = vmatpush2.xpose.msra.mxu0 0.0
        %1504 = vmatprep.subr.mxu0 0.0
        %1505 = vmatpush2.xpose.msra.mxu0 0.0
        %1506 = vmatprep.subr.mxu0 0.0
        %1507 = vmatpush2.xpose.msra.mxu0 0.0
        %1508 = vmatprep.subr.mxu0 0.0
        %1509 = vmatpush2.xpose.msra.mxu0 0.0
        %1510 = vmatprep.subr.mxu0 0.0
        %1511 = vmatpush2.xpose.msra.mxu0 0.0
        %1512 = vmatprep.subr.mxu0 0.0
        %1513 = vmatpush2.xpose.msra.mxu0 0.0
        %1514 = vmatprep.subr.mxu0 0.0
        %1515 = vmatpush2.xpose.msra.mxu0 0.0
        %1516 = vmatprep.subr.mxu0 0.0
        %1517 = vmatpush2.xpose.msra.mxu0 0.0
        %1518 = vmatprep.subr.mxu0 0.0
        %1519 = vmatpush2.xpose.msra.mxu0 0.0
        %1520 = vmatprep.subr.mxu0 0.0
        %1521 = vmatpush2.xpose.msra.mxu0 0.0
        %1522 = vmatprep.subr.mxu0 0.0
        %1523 = vmatpush2.xpose.msra.mxu0 0.0
        %1524 = vmatprep.mubr.f32.mxu0 0.0
        %1525 = vmatmul.mubr.f32.gmra.mxu0 %v1455
        %v1526 = vpop.f32.mrf.mxu0
        %v1527 = vadd.f32 0.0, %v1526
        %v1528 = vpop.f32.mrf.mxu0
        %1529 = vdwg.mxu0
        %v1531 = vsel %vm1225, %v949, 0
        %v1534 = vsel %vm1225, %v1085, 0
        %1536 = vmatprep.subr.mxu0 0.0
        %1537 = vmatpush1.xpose.msra.mxu0 0.0
        %1538 = vmatprep.subr.mxu0 0.0
        %1539 = vmatpush1.xpose.msra.mxu0 0.0
        %1540 = vmatprep.subr.mxu0 0.0
        %1541 = vmatpush1.xpose.msra.mxu0 0.0
        %1542 = vmatprep.subr.mxu0 0.0
        %1543 = vmatpush1.xpose.msra.mxu0 0.0
        %1544 = vmatprep.subr.mxu0 0.0
        %1545 = vmatpush1.xpose.msra.mxu0 0.0
        %1546 = vmatprep.subr.mxu0 0.0
        %1547 = vmatpush1.xpose.msra.mxu0 0.0
        %1548 = vmatprep.subr.mxu0 0.0
        %1549 = vmatpush1.xpose.msra.mxu0 0.0
        %1550 = vmatprep.subr.mxu0 0.0
        %1551 = vmatpush1.xpose.msra.mxu0 0.0
        %1552 = vmatprep.subr.mxu0 0.0
        %1553 = vmatpush1.xpose.msra.mxu0 0.0
        %1554 = vmatprep.subr.mxu0 0.0
        %1555 = vmatpush1.xpose.msra.mxu0 0.0
        %1556 = vmatprep.subr.mxu0 0.0
        %1557 = vmatpush1.xpose.msra.mxu0 0.0
        %1558 = vmatprep.subr.mxu0 0.0
        %1559 = vmatpush1.xpose.msra.mxu0 0.0
        %1560 = vmatprep.subr.mxu0 0.0
        %1561 = vmatpush1.xpose.msra.mxu0 0.0
        %1562 = vmatprep.subr.mxu0 0.0
        %1563 = vmatpush1.xpose.msra.mxu0 0.0
        %1564 = vmatprep.subr.mxu0 0.0
        %1565 = vmatpush1.xpose.msra.mxu0 0.0
        %1566 = vmatprep.subr.mxu0 0.0
        %1567 = vmatpush1.xpose.msra.mxu0 %v1534
        %1568 = vmatprep.subr.mxu0 0.0
        %1569 = vmatpush2.xpose.msra.mxu0 0.0
        %1570 = vmatprep.subr.mxu0 0.0
        %1571 = vmatpush2.xpose.msra.mxu0 0.0
        %1572 = vmatprep.subr.mxu0 0.0
        %1573 = vmatpush2.xpose.msra.mxu0 0.0
        %1574 = vmatprep.subr.mxu0 0.0
        %1575 = vmatpush2.xpose.msra.mxu0 0.0
        %1576 = vmatprep.subr.mxu0 0.0
        %1577 = vmatpush2.xpose.msra.mxu0 0.0
        %1578 = vmatprep.subr.mxu0 0.0
        %1579 = vmatpush2.xpose.msra.mxu0 0.0
        %1580 = vmatprep.subr.mxu0 0.0
        %1581 = vmatpush2.xpose.msra.mxu0 0.0
        %1582 = vmatprep.subr.mxu0 0.0
        %1583 = vmatpush2.xpose.msra.mxu0 0.0
        %1584 = vmatprep.subr.mxu0 0.0
        %1585 = vmatpush2.xpose.msra.mxu0 0.0
        %1586 = vmatprep.subr.mxu0 0.0
        %1587 = vmatpush2.xpose.msra.mxu0 0.0
        %1588 = vmatprep.subr.mxu0 0.0
        %1589 = vmatpush2.xpose.msra.mxu0 0.0
        %1590 = vmatprep.subr.mxu0 0.0
        %1591 = vmatpush2.xpose.msra.mxu0 0.0
        %1592 = vmatprep.subr.mxu0 0.0
        %1593 = vmatpush2.xpose.msra.mxu0 0.0
        %1594 = vmatprep.subr.mxu0 0.0
        %1595 = vmatpush2.xpose.msra.mxu0 0.0
        %1596 = vmatprep.subr.mxu0 0.0
        %1597 = vmatpush2.xpose.msra.mxu0 0.0
        %1598 = vmatprep.subr.mxu0 0.0
        %1599 = vmatpush2.xpose.msra.mxu0 0.0
        %1600 = vmatprep.mubr.f32.mxu0 0.0
        %1601 = vmatmul.mubr.f32.gmra.mxu0 %v1531
        %v1602 = vpop.f32.mrf.mxu0
        %v1603 = vadd.f32 0.0, %v1602
        %v1604 = vpop.f32.mrf.mxu0
        %1605 = vdwg.mxu0
        %v1607 = vsel %vm1225, %v950, 0
        %v1610 = vsel %vm1225, %v1086, 0
        %1612 = vmatprep.subr.mxu0 0.0
        %1613 = vmatpush1.xpose.msra.mxu0 0.0
        %1614 = vmatprep.subr.mxu0 0.0
        %1615 = vmatpush1.xpose.msra.mxu0 0.0
        %1616 = vmatprep.subr.mxu0 0.0
        %1617 = vmatpush1.xpose.msra.mxu0 0.0
        %1618 = vmatprep.subr.mxu0 0.0
        %1619 = vmatpush1.xpose.msra.mxu0 0.0
        %1620 = vmatprep.subr.mxu0 0.0
        %1621 = vmatpush1.xpose.msra.mxu0 0.0
        %1622 = vmatprep.subr.mxu0 0.0
        %1623 = vmatpush1.xpose.msra.mxu0 0.0
        %1624 = vmatprep.subr.mxu0 0.0
        %1625 = vmatpush1.xpose.msra.mxu0 0.0
        %1626 = vmatprep.subr.mxu0 0.0
        %1627 = vmatpush1.xpose.msra.mxu0 0.0
        %1628 = vmatprep.subr.mxu0 0.0
        %1629 = vmatpush1.xpose.msra.mxu0 0.0
        %1630 = vmatprep.subr.mxu0 0.0
        %1631 = vmatpush1.xpose.msra.mxu0 0.0
        %1632 = vmatprep.subr.mxu0 0.0
        %1633 = vmatpush1.xpose.msra.mxu0 0.0
        %1634 = vmatprep.subr.mxu0 0.0
        %1635 = vmatpush1.xpose.msra.mxu0 0.0
        %1636 = vmatprep.subr.mxu0 0.0
        %1637 = vmatpush1.xpose.msra.mxu0 0.0
        %1638 = vmatprep.subr.mxu0 0.0
        %1639 = vmatpush1.xpose.msra.mxu0 0.0
        %1640 = vmatprep.subr.mxu0 0.0
        %1641 = vmatpush1.xpose.msra.mxu0 0.0
        %1642 = vmatprep.subr.mxu0 0.0
        %1643 = vmatpush1.xpose.msra.mxu0 %v1610
        %1644 = vmatprep.subr.mxu0 0.0
        %1645 = vmatpush2.xpose.msra.mxu0 0.0
        %1646 = vmatprep.subr.mxu0 0.0
        %1647 = vmatpush2.xpose.msra.mxu0 0.0
        %1648 = vmatprep.subr.mxu0 0.0
        %1649 = vmatpush2.xpose.msra.mxu0 0.0
        %1650 = vmatprep.subr.mxu0 0.0
        %1651 = vmatpush2.xpose.msra.mxu0 0.0
        %1652 = vmatprep.subr.mxu0 0.0
        %1653 = vmatpush2.xpose.msra.mxu0 0.0
        %1654 = vmatprep.subr.mxu0 0.0
        %1655 = vmatpush2.xpose.msra.mxu0 0.0
        %1656 = vmatprep.subr.mxu0 0.0
        %1657 = vmatpush2.xpose.msra.mxu0 0.0
        %1658 = vmatprep.subr.mxu0 0.0
        %1659 = vmatpush2.xpose.msra.mxu0 0.0
        %1660 = vmatprep.subr.mxu0 0.0
        %1661 = vmatpush2.xpose.msra.mxu0 0.0
        %1662 = vmatprep.subr.mxu0 0.0
        %1663 = vmatpush2.xpose.msra.mxu0 0.0
        %1664 = vmatprep.subr.mxu0 0.0
        %1665 = vmatpush2.xpose.msra.mxu0 0.0
        %1666 = vmatprep.subr.mxu0 0.0
        %1667 = vmatpush2.xpose.msra.mxu0 0.0
        %1668 = vmatprep.subr.mxu0 0.0
        %1669 = vmatpush2.xpose.msra.mxu0 0.0
        %1670 = vmatprep.subr.mxu0 0.0
        %1671 = vmatpush2.xpose.msra.mxu0 0.0
        %1672 = vmatprep.subr.mxu0 0.0
        %1673 = vmatpush2.xpose.msra.mxu0 0.0
        %1674 = vmatprep.subr.mxu0 0.0
        %1675 = vmatpush2.xpose.msra.mxu0 0.0
        %1676 = vmatprep.mubr.f32.mxu0 0.0
        %1677 = vmatmul.mubr.f32.gmra.mxu0 %v1607
        %v1678 = vpop.f32.mrf.mxu0
        %v1679 = vadd.f32 0.0, %v1678
        %v1680 = vpop.f32.mrf.mxu0
        %1681 = vdwg.mxu0
        %v1683 = vsel %vm1225, %v951, 0
        %v1686 = vsel %vm1225, %v1087, 0
        %1688 = vmatprep.subr.mxu0 0.0
        %1689 = vmatpush1.xpose.msra.mxu0 0.0
        %1690 = vmatprep.subr.mxu0 0.0
        %1691 = vmatpush1.xpose.msra.mxu0 0.0
        %1692 = vmatprep.subr.mxu0 0.0
        %1693 = vmatpush1.xpose.msra.mxu0 0.0
        %1694 = vmatprep.subr.mxu0 0.0
        %1695 = vmatpush1.xpose.msra.mxu0 0.0
        %1696 = vmatprep.subr.mxu0 0.0
        %1697 = vmatpush1.xpose.msra.mxu0 0.0
        %1698 = vmatprep.subr.mxu0 0.0
        %1699 = vmatpush1.xpose.msra.mxu0 0.0
        %1700 = vmatprep.subr.mxu0 0.0
        %1701 = vmatpush1.xpose.msra.mxu0 0.0
        %1702 = vmatprep.subr.mxu0 0.0
        %1703 = vmatpush1.xpose.msra.mxu0 0.0
        %1704 = vmatprep.subr.mxu0 0.0
        %1705 = vmatpush1.xpose.msra.mxu0 0.0
        %1706 = vmatprep.subr.mxu0 0.0
        %1707 = vmatpush1.xpose.msra.mxu0 0.0
        %1708 = vmatprep.subr.mxu0 0.0
        %1709 = vmatpush1.xpose.msra.mxu0 0.0
        %1710 = vmatprep.subr.mxu0 0.0
        %1711 = vmatpush1.xpose.msra.mxu0 0.0
        %1712 = vmatprep.subr.mxu0 0.0
        %1713 = vmatpush1.xpose.msra.mxu0 0.0
        %1714 = vmatprep.subr.mxu0 0.0
        %1715 = vmatpush1.xpose.msra.mxu0 0.0
        %1716 = vmatprep.subr.mxu0 0.0
        %1717 = vmatpush1.xpose.msra.mxu0 0.0
        %1718 = vmatprep.subr.mxu0 0.0
        %1719 = vmatpush1.xpose.msra.mxu0 %v1686
        %1720 = vmatprep.subr.mxu0 0.0
        %1721 = vmatpush2.xpose.msra.mxu0 0.0
        %1722 = vmatprep.subr.mxu0 0.0
        %1723 = vmatpush2.xpose.msra.mxu0 0.0
        %1724 = vmatprep.subr.mxu0 0.0
        %1725 = vmatpush2.xpose.msra.mxu0 0.0
        %1726 = vmatprep.subr.mxu0 0.0
        %1727 = vmatpush2.xpose.msra.mxu0 0.0
        %1728 = vmatprep.subr.mxu0 0.0
        %1729 = vmatpush2.xpose.msra.mxu0 0.0
        %1730 = vmatprep.subr.mxu0 0.0
        %1731 = vmatpush2.xpose.msra.mxu0 0.0
        %1732 = vmatprep.subr.mxu0 0.0
        %1733 = vmatpush2.xpose.msra.mxu0 0.0
        %1734 = vmatprep.subr.mxu0 0.0
        %1735 = vmatpush2.xpose.msra.mxu0 0.0
        %1736 = vmatprep.subr.mxu0 0.0
        %1737 = vmatpush2.xpose.msra.mxu0 0.0
        %1738 = vmatprep.subr.mxu0 0.0
        %1739 = vmatpush2.xpose.msra.mxu0 0.0
        %1740 = vmatprep.subr.mxu0 0.0
        %1741 = vmatpush2.xpose.msra.mxu0 0.0
        %1742 = vmatprep.subr.mxu0 0.0
        %1743 = vmatpush2.xpose.msra.mxu0 0.0
        %1744 = vmatprep.subr.mxu0 0.0
        %1745 = vmatpush2.xpose.msra.mxu0 0.0
        %1746 = vmatprep.subr.mxu0 0.0
        %1747 = vmatpush2.xpose.msra.mxu0 0.0
        %1748 = vmatprep.subr.mxu0 0.0
        %1749 = vmatpush2.xpose.msra.mxu0 0.0
        %1750 = vmatprep.subr.mxu0 0.0
        %1751 = vmatpush2.xpose.msra.mxu0 0.0
        %1752 = vmatprep.mubr.f32.mxu0 0.0
        %1753 = vmatmul.mubr.f32.gmra.mxu0 %v1683
        %v1754 = vpop.f32.mrf.mxu0
        %v1755 = vadd.f32 0.0, %v1754
        %v1756 = vpop.f32.mrf.mxu0
        %1757 = vdwg.mxu0
        %v1759 = vsel %vm1225, %v952, 0
        %v1762 = vsel %vm1225, %v1088, 0
        %1764 = vmatprep.subr.mxu0 0.0
        %1765 = vmatpush1.xpose.msra.mxu0 0.0
        %1766 = vmatprep.subr.mxu0 0.0
        %1767 = vmatpush1.xpose.msra.mxu0 0.0
        %1768 = vmatprep.subr.mxu0 0.0
        %1769 = vmatpush1.xpose.msra.mxu0 0.0
        %1770 = vmatprep.subr.mxu0 0.0
        %1771 = vmatpush1.xpose.msra.mxu0 0.0
        %1772 = vmatprep.subr.mxu0 0.0
        %1773 = vmatpush1.xpose.msra.mxu0 0.0
        %1774 = vmatprep.subr.mxu0 0.0
        %1775 = vmatpush1.xpose.msra.mxu0 0.0
        %1776 = vmatprep.subr.mxu0 0.0
        %1777 = vmatpush1.xpose.msra.mxu0 0.0
        %1778 = vmatprep.subr.mxu0 0.0
        %1779 = vmatpush1.xpose.msra.mxu0 0.0
        %1780 = vmatprep.subr.mxu0 0.0
        %1781 = vmatpush1.xpose.msra.mxu0 0.0
        %1782 = vmatprep.subr.mxu0 0.0
        %1783 = vmatpush1.xpose.msra.mxu0 0.0
        %1784 = vmatprep.subr.mxu0 0.0
        %1785 = vmatpush1.xpose.msra.mxu0 0.0
        %1786 = vmatprep.subr.mxu0 0.0
        %1787 = vmatpush1.xpose.msra.mxu0 0.0
        %1788 = vmatprep.subr.mxu0 0.0
        %1789 = vmatpush1.xpose.msra.mxu0 0.0
        %1790 = vmatprep.subr.mxu0 0.0
        %1791 = vmatpush1.xpose.msra.mxu0 0.0
        %1792 = vmatprep.subr.mxu0 0.0
        %1793 = vmatpush1.xpose.msra.mxu0 0.0
        %1794 = vmatprep.subr.mxu0 0.0
        %1795 = vmatpush1.xpose.msra.mxu0 %v1762
        %1796 = vmatprep.subr.mxu0 0.0
        %1797 = vmatpush2.xpose.msra.mxu0 0.0
        %1798 = vmatprep.subr.mxu0 0.0
        %1799 = vmatpush2.xpose.msra.mxu0 0.0
        %1800 = vmatprep.subr.mxu0 0.0
        %1801 = vmatpush2.xpose.msra.mxu0 0.0
        %1802 = vmatprep.subr.mxu0 0.0
        %1803 = vmatpush2.xpose.msra.mxu0 0.0
        %1804 = vmatprep.subr.mxu0 0.0
        %1805 = vmatpush2.xpose.msra.mxu0 0.0
        %1806 = vmatprep.subr.mxu0 0.0
        %1807 = vmatpush2.xpose.msra.mxu0 0.0
        %1808 = vmatprep.subr.mxu0 0.0
        %1809 = vmatpush2.xpose.msra.mxu0 0.0
        %1810 = vmatprep.subr.mxu0 0.0
        %1811 = vmatpush2.xpose.msra.mxu0 0.0
        %1812 = vmatprep.subr.mxu0 0.0
        %1813 = vmatpush2.xpose.msra.mxu0 0.0
        %1814 = vmatprep.subr.mxu0 0.0
        %1815 = vmatpush2.xpose.msra.mxu0 0.0
        %1816 = vmatprep.subr.mxu0 0.0
        %1817 = vmatpush2.xpose.msra.mxu0 0.0
        %1818 = vmatprep.subr.mxu0 0.0
        %1819 = vmatpush2.xpose.msra.mxu0 0.0
        %1820 = vmatprep.subr.mxu0 0.0
        %1821 = vmatpush2.xpose.msra.mxu0 0.0
        %1822 = vmatprep.subr.mxu0 0.0
        %1823 = vmatpush2.xpose.msra.mxu0 0.0
        %1824 = vmatprep.subr.mxu0 0.0
        %1825 = vmatpush2.xpose.msra.mxu0 0.0
        %1826 = vmatprep.subr.mxu0 0.0
        %1827 = vmatpush2.xpose.msra.mxu0 0.0
        %1828 = vmatprep.mubr.f32.mxu0 0.0
        %1829 = vmatmul.mubr.f32.gmra.mxu0 %v1759
        %v1830 = vpop.f32.mrf.mxu0
        %v1831 = vadd.f32 0.0, %v1830
        %v1832 = vpop.f32.mrf.mxu0
        %1833 = vdwg.mxu0
        %v1834 = vlaneseq
        %v1835 = vand.u32 %v1834, 127
        %vm1836 = vcmp.lt.s32.totalorder %v1835, 3
        %v1837 = vsel %vm1836, 1, 0
        %vm1838 = vcmp.eq.s32.totalorder %v1837, 1
        %v1839 = vsel %vm1838, %v1299, -1e+30
        %v1840 = vsel %vm1838, %v1375, -1e+30
        %v1841 = vsel %vm1838, %v1451, -1e+30
        %v1842 = vsel %vm1838, %v1527, -1e+30
        %v1843 = vsel %vm1838, %v1603, -1e+30
        %v1844 = vsel %vm1838, %v1679, -1e+30
        %v1845 = vsel %vm1838, %v1755, -1e+30
        %v1846 = vsel %vm1838, %v1831, -1e+30
        %vm1847 = vcmask 64512
        %v1848 = vsel %vm1847, %v1839, -inf
        %1849 = vmax.xlane.f32.xlu0 %v1848
        %v1850 = vpop.xlane.xlu0 %1849
        %v1851 = vsel %vm1847, %v1840, -inf
        %1852 = vmax.xlane.f32.xlu0 %v1851
        %v1853 = vpop.xlane.xlu0 %1852
        %v1854 = vsel %vm1847, %v1841, -inf
        %1855 = vmax.xlane.f32.xlu0 %v1854
        %v1856 = vpop.xlane.xlu0 %1855
        %v1857 = vsel %vm1847, %v1842, -inf
        %1858 = vmax.xlane.f32.xlu0 %v1857
        %v1859 = vpop.xlane.xlu0 %1858
        %v1860 = vsel %vm1847, %v1843, -inf
        %1861 = vmax.xlane.f32.xlu0 %v1860
        %v1862 = vpop.xlane.xlu0 %1861
        %v1863 = vsel %vm1847, %v1844, -inf
        %1864 = vmax.xlane.f32.xlu0 %v1863
        %v1865 = vpop.xlane.xlu0 %1864
        %v1866 = vsel %vm1847, %v1845, -inf
        %1867 = vmax.xlane.f32.xlu0 %v1866
        %v1868 = vpop.xlane.xlu0 %1867
        %v1869 = vsel %vm1847, %v1846, -inf
        %1870 = vmax.xlane.f32.xlu0 %v1869
        %v1871 = vpop.xlane.xlu0 %1870
        %v1872 = vsub.f32 %v1839, %v1850
        %v1873 = vsub.f32 %v1840, %v1853
        %v1874 = vsub.f32 %v1841, %v1856
        %v1875 = vsub.f32 %v1842, %v1859
        %v1876 = vsub.f32 %v1843, %v1862
        %v1877 = vsub.f32 %v1844, %v1865
        %v1878 = vsub.f32 %v1845, %v1868
        %v1879 = vsub.f32 %v1846, %v1871
        %v1880 = vmul.f32 %v1872, 1.442695
        %v1881 = vpow.pop %v1880
        %v1882 = vmul.f32 %v1873, 1.442695
        %v1883 = vpow.pop %v1882
        %v1884 = vmul.f32 %v1874, 1.442695
        %v1885 = vpow.pop %v1884
        %v1886 = vmul.f32 %v1875, 1.442695
        %v1887 = vpow.pop %v1886
        %v1888 = vmul.f32 %v1876, 1.442695
        %v1889 = vpow.pop %v1888
        %v1890 = vmul.f32 %v1877, 1.442695
        %v1891 = vpow.pop %v1890
        %v1892 = vmul.f32 %v1878, 1.442695
        %v1893 = vpow.pop %v1892
        %v1894 = vmul.f32 %v1879, 1.442695
        %v1895 = vpow.pop %v1894
        %v1896 = vsel %vm1847, %v1881, 0.0
        %1897 = vadd.xlane.f32.xlu0 %v1896
        %v1898 = vpop.xlane.xlu0 %1897
        %v1899 = vsel %vm1847, %v1883, 0.0
        %1900 = vadd.xlane.f32.xlu0 %v1899
        %v1901 = vpop.xlane.xlu0 %1900
        %v1902 = vsel %vm1847, %v1885, 0.0
        %1903 = vadd.xlane.f32.xlu0 %v1902
        %v1904 = vpop.xlane.xlu0 %1903
        %v1905 = vsel %vm1847, %v1887, 0.0
        %1906 = vadd.xlane.f32.xlu0 %v1905
        %v1907 = vpop.xlane.xlu0 %1906
        %v1908 = vsel %vm1847, %v1889, 0.0
        %1909 = vadd.xlane.f32.xlu0 %v1908
        %v1910 = vpop.xlane.xlu0 %1909
        %v1911 = vsel %vm1847, %v1891, 0.0
        %1912 = vadd.xlane.f32.xlu0 %v1911
        %v1913 = vpop.xlane.xlu0 %1912
        %v1914 = vsel %vm1847, %v1893, 0.0
        %1915 = vadd.xlane.f32.xlu0 %v1914
        %v1916 = vpop.xlane.xlu0 %1915
        %v1917 = vsel %vm1847, %v1895, 0.0
        %1918 = vadd.xlane.f32.xlu0 %v1917
        %v1919 = vpop.xlane.xlu0 %1918
        %v1921 = vsel %vm1847, %v1881, 0
        %1923 = vmatprep.subr.mxu0 0.0
        %1924 = vmatpush1.msra.mxu0 0.0
        %1925 = vmatprep.subr.mxu0 0.0
        %1926 = vmatpush1.msra.mxu0 0.0
        %1927 = vmatprep.subr.mxu0 0.0
        %1928 = vmatpush1.msra.mxu0 0.0
        %1929 = vmatprep.subr.mxu0 0.0
        %1930 = vmatpush1.msra.mxu0 0.0
        %1931 = vmatprep.subr.mxu0 0.0
        %1932 = vmatpush1.msra.mxu0 0.0
        %1933 = vmatprep.subr.mxu0 0.0
        %1934 = vmatpush1.msra.mxu0 0.0
        %1935 = vmatprep.subr.mxu0 0.0
        %1936 = vmatpush1.msra.mxu0 0.0
        %1937 = vmatprep.subr.mxu0 0.0
        %1938 = vmatpush1.msra.mxu0 0.0
        %1939 = vmatprep.subr.mxu0 0.0
        %1940 = vmatpush1.msra.mxu0 0.0
        %1941 = vmatprep.subr.mxu0 0.0
        %1942 = vmatpush1.msra.mxu0 0.0
        %1943 = vmatprep.subr.mxu0 0.0
        %1944 = vmatpush1.msra.mxu0 0.0
        %1945 = vmatprep.subr.mxu0 0.0
        %1946 = vmatpush1.msra.mxu0 0.0
        %1947 = vmatprep.subr.mxu0 0.0
        %1948 = vmatpush1.msra.mxu0 0.0
        %1949 = vmatprep.subr.mxu0 0.0
        %1950 = vmatpush1.msra.mxu0 0.0
        %1951 = vmatprep.subr.mxu0 0.0
        %1952 = vmatpush1.msra.mxu0 0.0
        %1953 = vmatprep.subr.mxu0 0.0
        %1954 = vmatpush1.msra.mxu0 %v1217
        %1955 = vmatprep.subr.mxu0 0.0
        %1956 = vmatpush2.msra.mxu0 0.0
        %1957 = vmatprep.subr.mxu0 0.0
        %1958 = vmatpush2.msra.mxu0 0.0
        %1959 = vmatprep.subr.mxu0 0.0
        %1960 = vmatpush2.msra.mxu0 0.0
        %1961 = vmatprep.subr.mxu0 0.0
        %1962 = vmatpush2.msra.mxu0 0.0
        %1963 = vmatprep.subr.mxu0 0.0
        %1964 = vmatpush2.msra.mxu0 0.0
        %1965 = vmatprep.subr.mxu0 0.0
        %1966 = vmatpush2.msra.mxu0 0.0
        %1967 = vmatprep.subr.mxu0 0.0
        %1968 = vmatpush2.msra.mxu0 0.0
        %1969 = vmatprep.subr.mxu0 0.0
        %1970 = vmatpush2.msra.mxu0 0.0
        %1971 = vmatprep.subr.mxu0 0.0
        %1972 = vmatpush2.msra.mxu0 0.0
        %1973 = vmatprep.subr.mxu0 0.0
        %1974 = vmatpush2.msra.mxu0 0.0
        %1975 = vmatprep.subr.mxu0 0.0
        %1976 = vmatpush2.msra.mxu0 0.0
        %1977 = vmatprep.subr.mxu0 0.0
        %1978 = vmatpush2.msra.mxu0 0.0
        %1979 = vmatprep.subr.mxu0 0.0
        %1980 = vmatpush2.msra.mxu0 0.0
        %1981 = vmatprep.subr.mxu0 0.0
        %1982 = vmatpush2.msra.mxu0 0.0
        %1983 = vmatprep.subr.mxu0 0.0
        %1984 = vmatpush2.msra.mxu0 0.0
        %1985 = vmatprep.subr.mxu0 0.0
        %1986 = vmatpush2.msra.mxu0 0.0
        %1987 = vmatprep.mubr.f32.mxu0 0.0
        %1988 = vmatmul.mubr.f32.gmra.mxu0 %v1921
        %v1989 = vpop.f32.mrf.mxu0
        %v1990 = vadd.f32 0.0, %v1989
        %v1991 = vpop.f32.mrf.mxu0
        %1992 = vdwg.mxu0
        %v1994 = vsel %vm1847, %v1883, 0
        %1996 = vmatprep.subr.mxu0 0.0
        %1997 = vmatpush1.msra.mxu0 0.0
        %1998 = vmatprep.subr.mxu0 0.0
        %1999 = vmatpush1.msra.mxu0 0.0
        %2000 = vmatprep.subr.mxu0 0.0
        %2001 = vmatpush1.msra.mxu0 0.0
        %2002 = vmatprep.subr.mxu0 0.0
        %2003 = vmatpush1.msra.mxu0 0.0
        %2004 = vmatprep.subr.mxu0 0.0
        %2005 = vmatpush1.msra.mxu0 0.0
        %2006 = vmatprep.subr.mxu0 0.0
        %2007 = vmatpush1.msra.mxu0 0.0
        %2008 = vmatprep.subr.mxu0 0.0
        %2009 = vmatpush1.msra.mxu0 0.0
        %2010 = vmatprep.subr.mxu0 0.0
        %2011 = vmatpush1.msra.mxu0 0.0
        %2012 = vmatprep.subr.mxu0 0.0
        %2013 = vmatpush1.msra.mxu0 0.0
        %2014 = vmatprep.subr.mxu0 0.0
        %2015 = vmatpush1.msra.mxu0 0.0
        %2016 = vmatprep.subr.mxu0 0.0
        %2017 = vmatpush1.msra.mxu0 0.0
        %2018 = vmatprep.subr.mxu0 0.0
        %2019 = vmatpush1.msra.mxu0 0.0
        %2020 = vmatprep.subr.mxu0 0.0
        %2021 = vmatpush1.msra.mxu0 0.0
        %2022 = vmatprep.subr.mxu0 0.0
        %2023 = vmatpush1.msra.mxu0 0.0
        %2024 = vmatprep.subr.mxu0 0.0
        %2025 = vmatpush1.msra.mxu0 0.0
        %2026 = vmatprep.subr.mxu0 0.0
        %2027 = vmatpush1.msra.mxu0 %v1218
        %2028 = vmatprep.subr.mxu0 0.0
        %2029 = vmatpush2.msra.mxu0 0.0
        %2030 = vmatprep.subr.mxu0 0.0
        %2031 = vmatpush2.msra.mxu0 0.0
        %2032 = vmatprep.subr.mxu0 0.0
        %2033 = vmatpush2.msra.mxu0 0.0
        %2034 = vmatprep.subr.mxu0 0.0
        %2035 = vmatpush2.msra.mxu0 0.0
        %2036 = vmatprep.subr.mxu0 0.0
        %2037 = vmatpush2.msra.mxu0 0.0
        %2038 = vmatprep.subr.mxu0 0.0
        %2039 = vmatpush2.msra.mxu0 0.0
        %2040 = vmatprep.subr.mxu0 0.0
        %2041 = vmatpush2.msra.mxu0 0.0
        %2042 = vmatprep.subr.mxu0 0.0
        %2043 = vmatpush2.msra.mxu0 0.0
        %2044 = vmatprep.subr.mxu0 0.0
        %2045 = vmatpush2.msra.mxu0 0.0
        %2046 = vmatprep.subr.mxu0 0.0
        %2047 = vmatpush2.msra.mxu0 0.0
        %2048 = vmatprep.subr.mxu0 0.0
        %2049 = vmatpush2.msra.mxu0 0.0
        %2050 = vmatprep.subr.mxu0 0.0
        %2051 = vmatpush2.msra.mxu0 0.0
        %2052 = vmatprep.subr.mxu0 0.0
        %2053 = vmatpush2.msra.mxu0 0.0
        %2054 = vmatprep.subr.mxu0 0.0
        %2055 = vmatpush2.msra.mxu0 0.0
        %2056 = vmatprep.subr.mxu0 0.0
        %2057 = vmatpush2.msra.mxu0 0.0
        %2058 = vmatprep.subr.mxu0 0.0
        %2059 = vmatpush2.msra.mxu0 0.0
        %2060 = vmatprep.mubr.f32.mxu0 0.0
        %2061 = vmatmul.mubr.f32.gmra.mxu0 %v1994
        %v2062 = vpop.f32.mrf.mxu0
        %v2063 = vadd.f32 0.0, %v2062
        %v2064 = vpop.f32.mrf.mxu0
        %2065 = vdwg.mxu0
        %v2067 = vsel %vm1847, %v1885, 0
        %2069 = vmatprep.subr.mxu0 0.0
        %2070 = vmatpush1.msra.mxu0 0.0
        %2071 = vmatprep.subr.mxu0 0.0
        %2072 = vmatpush1.msra.mxu0 0.0
        %2073 = vmatprep.subr.mxu0 0.0
        %2074 = vmatpush1.msra.mxu0 0.0
        %2075 = vmatprep.subr.mxu0 0.0
        %2076 = vmatpush1.msra.mxu0 0.0
        %2077 = vmatprep.subr.mxu0 0.0
        %2078 = vmatpush1.msra.mxu0 0.0
        %2079 = vmatprep.subr.mxu0 0.0
        %2080 = vmatpush1.msra.mxu0 0.0
        %2081 = vmatprep.subr.mxu0 0.0
        %2082 = vmatpush1.msra.mxu0 0.0
        %2083 = vmatprep.subr.mxu0 0.0
        %2084 = vmatpush1.msra.mxu0 0.0
        %2085 = vmatprep.subr.mxu0 0.0
        %2086 = vmatpush1.msra.mxu0 0.0
        %2087 = vmatprep.subr.mxu0 0.0
        %2088 = vmatpush1.msra.mxu0 0.0
        %2089 = vmatprep.subr.mxu0 0.0
        %2090 = vmatpush1.msra.mxu0 0.0
        %2091 = vmatprep.subr.mxu0 0.0
        %2092 = vmatpush1.msra.mxu0 0.0
        %2093 = vmatprep.subr.mxu0 0.0
        %2094 = vmatpush1.msra.mxu0 0.0
        %2095 = vmatprep.subr.mxu0 0.0
        %2096 = vmatpush1.msra.mxu0 0.0
        %2097 = vmatprep.subr.mxu0 0.0
        %2098 = vmatpush1.msra.mxu0 0.0
        %2099 = vmatprep.subr.mxu0 0.0
        %2100 = vmatpush1.msra.mxu0 %v1219
        %2101 = vmatprep.subr.mxu0 0.0
        %2102 = vmatpush2.msra.mxu0 0.0
        %2103 = vmatprep.subr.mxu0 0.0
        %2104 = vmatpush2.msra.mxu0 0.0
        %2105 = vmatprep.subr.mxu0 0.0
        %2106 = vmatpush2.msra.mxu0 0.0
        %2107 = vmatprep.subr.mxu0 0.0
        %2108 = vmatpush2.msra.mxu0 0.0
        %2109 = vmatprep.subr.mxu0 0.0
        %2110 = vmatpush2.msra.mxu0 0.0
        %2111 = vmatprep.subr.mxu0 0.0
        %2112 = vmatpush2.msra.mxu0 0.0
        %2113 = vmatprep.subr.mxu0 0.0
        %2114 = vmatpush2.msra.mxu0 0.0
        %2115 = vmatprep.subr.mxu0 0.0
        %2116 = vmatpush2.msra.mxu0 0.0
        %2117 = vmatprep.subr.mxu0 0.0
        %2118 = vmatpush2.msra.mxu0 0.0
        %2119 = vmatprep.subr.mxu0 0.0
        %2120 = vmatpush2.msra.mxu0 0.0
        %2121 = vmatprep.subr.mxu0 0.0
        %2122 = vmatpush2.msra.mxu0 0.0
        %2123 = vmatprep.subr.mxu0 0.0
        %2124 = vmatpush2.msra.mxu0 0.0
        %2125 = vmatprep.subr.mxu0 0.0
        %2126 = vmatpush2.msra.mxu0 0.0
        %2127 = vmatprep.subr.mxu0 0.0
        %2128 = vmatpush2.msra.mxu0 0.0
        %2129 = vmatprep.subr.mxu0 0.0
        %2130 = vmatpush2.msra.mxu0 0.0
        %2131 = vmatprep.subr.mxu0 0.0
        %2132 = vmatpush2.msra.mxu0 0.0
        %2133 = vmatprep.mubr.f32.mxu0 0.0
        %2134 = vmatmul.mubr.f32.gmra.mxu0 %v2067
        %v2135 = vpop.f32.mrf.mxu0
        %v2136 = vadd.f32 0.0, %v2135
        %v2137 = vpop.f32.mrf.mxu0
        %2138 = vdwg.mxu0
        %v2140 = vsel %vm1847, %v1887, 0
        %2142 = vmatprep.subr.mxu0 0.0
        %2143 = vmatpush1.msra.mxu0 0.0
        %2144 = vmatprep.subr.mxu0 0.0
        %2145 = vmatpush1.msra.mxu0 0.0
        %2146 = vmatprep.subr.mxu0 0.0
        %2147 = vmatpush1.msra.mxu0 0.0
        %2148 = vmatprep.subr.mxu0 0.0
        %2149 = vmatpush1.msra.mxu0 0.0
        %2150 = vmatprep.subr.mxu0 0.0
        %2151 = vmatpush1.msra.mxu0 0.0
        %2152 = vmatprep.subr.mxu0 0.0
        %2153 = vmatpush1.msra.mxu0 0.0
        %2154 = vmatprep.subr.mxu0 0.0
        %2155 = vmatpush1.msra.mxu0 0.0
        %2156 = vmatprep.subr.mxu0 0.0
        %2157 = vmatpush1.msra.mxu0 0.0
        %2158 = vmatprep.subr.mxu0 0.0
        %2159 = vmatpush1.msra.mxu0 0.0
        %2160 = vmatprep.subr.mxu0 0.0
        %2161 = vmatpush1.msra.mxu0 0.0
        %2162 = vmatprep.subr.mxu0 0.0
        %2163 = vmatpush1.msra.mxu0 0.0
        %2164 = vmatprep.subr.mxu0 0.0
        %2165 = vmatpush1.msra.mxu0 0.0
        %2166 = vmatprep.subr.mxu0 0.0
        %2167 = vmatpush1.msra.mxu0 0.0
        %2168 = vmatprep.subr.mxu0 0.0
        %2169 = vmatpush1.msra.mxu0 0.0
        %2170 = vmatprep.subr.mxu0 0.0
        %2171 = vmatpush1.msra.mxu0 0.0
        %2172 = vmatprep.subr.mxu0 0.0
        %2173 = vmatpush1.msra.mxu0 %v1220
        %2174 = vmatprep.subr.mxu0 0.0
        %2175 = vmatpush2.msra.mxu0 0.0
        %2176 = vmatprep.subr.mxu0 0.0
        %2177 = vmatpush2.msra.mxu0 0.0
        %2178 = vmatprep.subr.mxu0 0.0
        %2179 = vmatpush2.msra.mxu0 0.0
        %2180 = vmatprep.subr.mxu0 0.0
        %2181 = vmatpush2.msra.mxu0 0.0
        %2182 = vmatprep.subr.mxu0 0.0
        %2183 = vmatpush2.msra.mxu0 0.0
        %2184 = vmatprep.subr.mxu0 0.0
        %2185 = vmatpush2.msra.mxu0 0.0
        %2186 = vmatprep.subr.mxu0 0.0
        %2187 = vmatpush2.msra.mxu0 0.0
        %2188 = vmatprep.subr.mxu0 0.0
        %2189 = vmatpush2.msra.mxu0 0.0
        %2190 = vmatprep.subr.mxu0 0.0
        %2191 = vmatpush2.msra.mxu0 0.0
        %2192 = vmatprep.subr.mxu0 0.0
        %2193 = vmatpush2.msra.mxu0 0.0
        %2194 = vmatprep.subr.mxu0 0.0
        %2195 = vmatpush2.msra.mxu0 0.0
        %2196 = vmatprep.subr.mxu0 0.0
        %2197 = vmatpush2.msra.mxu0 0.0
        %2198 = vmatprep.subr.mxu0 0.0
        %2199 = vmatpush2.msra.mxu0 0.0
        %2200 = vmatprep.subr.mxu0 0.0
        %2201 = vmatpush2.msra.mxu0 0.0
        %2202 = vmatprep.subr.mxu0 0.0
        %2203 = vmatpush2.msra.mxu0 0.0
        %2204 = vmatprep.subr.mxu0 0.0
        %2205 = vmatpush2.msra.mxu0 0.0
        %2206 = vmatprep.mubr.f32.mxu0 0.0
        %2207 = vmatmul.mubr.f32.gmra.mxu0 %v2140
        %v2208 = vpop.f32.mrf.mxu0
        %v2209 = vadd.f32 0.0, %v2208
        %v2210 = vpop.f32.mrf.mxu0
        %2211 = vdwg.mxu0
        %v2213 = vsel %vm1847, %v1889, 0
        %2215 = vmatprep.subr.mxu0 0.0
        %2216 = vmatpush1.msra.mxu0 0.0
        %2217 = vmatprep.subr.mxu0 0.0
        %2218 = vmatpush1.msra.mxu0 0.0
        %2219 = vmatprep.subr.mxu0 0.0
        %2220 = vmatpush1.msra.mxu0 0.0
        %2221 = vmatprep.subr.mxu0 0.0
        %2222 = vmatpush1.msra.mxu0 0.0
        %2223 = vmatprep.subr.mxu0 0.0
        %2224 = vmatpush1.msra.mxu0 0.0
        %2225 = vmatprep.subr.mxu0 0.0
        %2226 = vmatpush1.msra.mxu0 0.0
        %2227 = vmatprep.subr.mxu0 0.0
        %2228 = vmatpush1.msra.mxu0 0.0
        %2229 = vmatprep.subr.mxu0 0.0
        %2230 = vmatpush1.msra.mxu0 0.0
        %2231 = vmatprep.subr.mxu0 0.0
        %2232 = vmatpush1.msra.mxu0 0.0
        %2233 = vmatprep.subr.mxu0 0.0
        %2234 = vmatpush1.msra.mxu0 0.0
        %2235 = vmatprep.subr.mxu0 0.0
        %2236 = vmatpush1.msra.mxu0 0.0
        %2237 = vmatprep.subr.mxu0 0.0
        %2238 = vmatpush1.msra.mxu0 0.0
        %2239 = vmatprep.subr.mxu0 0.0
        %2240 = vmatpush1.msra.mxu0 0.0
        %2241 = vmatprep.subr.mxu0 0.0
        %2242 = vmatpush1.msra.mxu0 0.0
        %2243 = vmatprep.subr.mxu0 0.0
        %2244 = vmatpush1.msra.mxu0 0.0
        %2245 = vmatprep.subr.mxu0 0.0
        %2246 = vmatpush1.msra.mxu0 %v1221
        %2247 = vmatprep.subr.mxu0 0.0
        %2248 = vmatpush2.msra.mxu0 0.0
        %2249 = vmatprep.subr.mxu0 0.0
        %2250 = vmatpush2.msra.mxu0 0.0
        %2251 = vmatprep.subr.mxu0 0.0
        %2252 = vmatpush2.msra.mxu0 0.0
        %2253 = vmatprep.subr.mxu0 0.0
        %2254 = vmatpush2.msra.mxu0 0.0
        %2255 = vmatprep.subr.mxu0 0.0
        %2256 = vmatpush2.msra.mxu0 0.0
        %2257 = vmatprep.subr.mxu0 0.0
        %2258 = vmatpush2.msra.mxu0 0.0
        %2259 = vmatprep.subr.mxu0 0.0
        %2260 = vmatpush2.msra.mxu0 0.0
        %2261 = vmatprep.subr.mxu0 0.0
        %2262 = vmatpush2.msra.mxu0 0.0
        %2263 = vmatprep.subr.mxu0 0.0
        %2264 = vmatpush2.msra.mxu0 0.0
        %2265 = vmatprep.subr.mxu0 0.0
        %2266 = vmatpush2.msra.mxu0 0.0
        %2267 = vmatprep.subr.mxu0 0.0
        %2268 = vmatpush2.msra.mxu0 0.0
        %2269 = vmatprep.subr.mxu0 0.0
        %2270 = vmatpush2.msra.mxu0 0.0
        %2271 = vmatprep.subr.mxu0 0.0
        %2272 = vmatpush2.msra.mxu0 0.0
        %2273 = vmatprep.subr.mxu0 0.0
        %2274 = vmatpush2.msra.mxu0 0.0
        %2275 = vmatprep.subr.mxu0 0.0
        %2276 = vmatpush2.msra.mxu0 0.0
        %2277 = vmatprep.subr.mxu0 0.0
        %2278 = vmatpush2.msra.mxu0 0.0
        %2279 = vmatprep.mubr.f32.mxu0 0.0
        %2280 = vmatmul.mubr.f32.gmra.mxu0 %v2213
        %v2281 = vpop.f32.mrf.mxu0
        %v2282 = vadd.f32 0.0, %v2281
        %v2283 = vpop.f32.mrf.mxu0
        %2284 = vdwg.mxu0
        %v2286 = vsel %vm1847, %v1891, 0
        %2288 = vmatprep.subr.mxu0 0.0
        %2289 = vmatpush1.msra.mxu0 0.0
        %2290 = vmatprep.subr.mxu0 0.0
        %2291 = vmatpush1.msra.mxu0 0.0
        %2292 = vmatprep.subr.mxu0 0.0
        %2293 = vmatpush1.msra.mxu0 0.0
        %2294 = vmatprep.subr.mxu0 0.0
        %2295 = vmatpush1.msra.mxu0 0.0
        %2296 = vmatprep.subr.mxu0 0.0
        %2297 = vmatpush1.msra.mxu0 0.0
        %2298 = vmatprep.subr.mxu0 0.0
        %2299 = vmatpush1.msra.mxu0 0.0
        %2300 = vmatprep.subr.mxu0 0.0
        %2301 = vmatpush1.msra.mxu0 0.0
        %2302 = vmatprep.subr.mxu0 0.0
        %2303 = vmatpush1.msra.mxu0 0.0
        %2304 = vmatprep.subr.mxu0 0.0
        %2305 = vmatpush1.msra.mxu0 0.0
        %2306 = vmatprep.subr.mxu0 0.0
        %2307 = vmatpush1.msra.mxu0 0.0
        %2308 = vmatprep.subr.mxu0 0.0
        %2309 = vmatpush1.msra.mxu0 0.0
        %2310 = vmatprep.subr.mxu0 0.0
        %2311 = vmatpush1.msra.mxu0 0.0
        %2312 = vmatprep.subr.mxu0 0.0
        %2313 = vmatpush1.msra.mxu0 0.0
        %2314 = vmatprep.subr.mxu0 0.0
        %2315 = vmatpush1.msra.mxu0 0.0
        %2316 = vmatprep.subr.mxu0 0.0
        %2317 = vmatpush1.msra.mxu0 0.0
        %2318 = vmatprep.subr.mxu0 0.0
        %2319 = vmatpush1.msra.mxu0 %v1222
        %2320 = vmatprep.subr.mxu0 0.0
        %2321 = vmatpush2.msra.mxu0 0.0
        %2322 = vmatprep.subr.mxu0 0.0
        %2323 = vmatpush2.msra.mxu0 0.0
        %2324 = vmatprep.subr.mxu0 0.0
        %2325 = vmatpush2.msra.mxu0 0.0
        %2326 = vmatprep.subr.mxu0 0.0
        %2327 = vmatpush2.msra.mxu0 0.0
        %2328 = vmatprep.subr.mxu0 0.0
        %2329 = vmatpush2.msra.mxu0 0.0
        %2330 = vmatprep.subr.mxu0 0.0
        %2331 = vmatpush2.msra.mxu0 0.0
        %2332 = vmatprep.subr.mxu0 0.0
        %2333 = vmatpush2.msra.mxu0 0.0
        %2334 = vmatprep.subr.mxu0 0.0
        %2335 = vmatpush2.msra.mxu0 0.0
        %2336 = vmatprep.subr.mxu0 0.0
        %2337 = vmatpush2.msra.mxu0 0.0
        %2338 = vmatprep.subr.mxu0 0.0
        %2339 = vmatpush2.msra.mxu0 0.0
        %2340 = vmatprep.subr.mxu0 0.0
        %2341 = vmatpush2.msra.mxu0 0.0
        %2342 = vmatprep.subr.mxu0 0.0
        %2343 = vmatpush2.msra.mxu0 0.0
        %2344 = vmatprep.subr.mxu0 0.0
        %2345 = vmatpush2.msra.mxu0 0.0
        %2346 = vmatprep.subr.mxu0 0.0
        %2347 = vmatpush2.msra.mxu0 0.0
        %2348 = vmatprep.subr.mxu0 0.0
        %2349 = vmatpush2.msra.mxu0 0.0
        %2350 = vmatprep.subr.mxu0 0.0
        %2351 = vmatpush2.msra.mxu0 0.0
        %2352 = vmatprep.mubr.f32.mxu0 0.0
        %2353 = vmatmul.mubr.f32.gmra.mxu0 %v2286
        %v2354 = vpop.f32.mrf.mxu0
        %v2355 = vadd.f32 0.0, %v2354
        %v2356 = vpop.f32.mrf.mxu0
        %2357 = vdwg.mxu0
        %v2359 = vsel %vm1847, %v1893, 0
        %2361 = vmatprep.subr.mxu0 0.0
        %2362 = vmatpush1.msra.mxu0 0.0
        %2363 = vmatprep.subr.mxu0 0.0
        %2364 = vmatpush1.msra.mxu0 0.0
        %2365 = vmatprep.subr.mxu0 0.0
        %2366 = vmatpush1.msra.mxu0 0.0
        %2367 = vmatprep.subr.mxu0 0.0
        %2368 = vmatpush1.msra.mxu0 0.0
        %2369 = vmatprep.subr.mxu0 0.0
        %2370 = vmatpush1.msra.mxu0 0.0
        %2371 = vmatprep.subr.mxu0 0.0
        %2372 = vmatpush1.msra.mxu0 0.0
        %2373 = vmatprep.subr.mxu0 0.0
        %2374 = vmatpush1.msra.mxu0 0.0
        %2375 = vmatprep.subr.mxu0 0.0
        %2376 = vmatpush1.msra.mxu0 0.0
        %2377 = vmatprep.subr.mxu0 0.0
        %2378 = vmatpush1.msra.mxu0 0.0
        %2379 = vmatprep.subr.mxu0 0.0
        %2380 = vmatpush1.msra.mxu0 0.0
        %2381 = vmatprep.subr.mxu0 0.0
        %2382 = vmatpush1.msra.mxu0 0.0
        %2383 = vmatprep.subr.mxu0 0.0
        %2384 = vmatpush1.msra.mxu0 0.0
        %2385 = vmatprep.subr.mxu0 0.0
        %2386 = vmatpush1.msra.mxu0 0.0
        %2387 = vmatprep.subr.mxu0 0.0
        %2388 = vmatpush1.msra.mxu0 0.0
        %2389 = vmatprep.subr.mxu0 0.0
        %2390 = vmatpush1.msra.mxu0 0.0
        %2391 = vmatprep.subr.mxu0 0.0
        %2392 = vmatpush1.msra.mxu0 %v1223
        %2393 = vmatprep.subr.mxu0 0.0
        %2394 = vmatpush2.msra.mxu0 0.0
        %2395 = vmatprep.subr.mxu0 0.0
        %2396 = vmatpush2.msra.mxu0 0.0
        %2397 = vmatprep.subr.mxu0 0.0
        %2398 = vmatpush2.msra.mxu0 0.0
        %2399 = vmatprep.subr.mxu0 0.0
        %2400 = vmatpush2.msra.mxu0 0.0
        %2401 = vmatprep.subr.mxu0 0.0
        %2402 = vmatpush2.msra.mxu0 0.0
        %2403 = vmatprep.subr.mxu0 0.0
        %2404 = vmatpush2.msra.mxu0 0.0
        %2405 = vmatprep.subr.mxu0 0.0
        %2406 = vmatpush2.msra.mxu0 0.0
        %2407 = vmatprep.subr.mxu0 0.0
        %2408 = vmatpush2.msra.mxu0 0.0
        %2409 = vmatprep.subr.mxu0 0.0
        %2410 = vmatpush2.msra.mxu0 0.0
        %2411 = vmatprep.subr.mxu0 0.0
        %2412 = vmatpush2.msra.mxu0 0.0
        %2413 = vmatprep.subr.mxu0 0.0
        %2414 = vmatpush2.msra.mxu0 0.0
        %2415 = vmatprep.subr.mxu0 0.0
        %2416 = vmatpush2.msra.mxu0 0.0
        %2417 = vmatprep.subr.mxu0 0.0
        %2418 = vmatpush2.msra.mxu0 0.0
        %2419 = vmatprep.subr.mxu0 0.0
        %2420 = vmatpush2.msra.mxu0 0.0
        %2421 = vmatprep.subr.mxu0 0.0
        %2422 = vmatpush2.msra.mxu0 0.0
        %2423 = vmatprep.subr.mxu0 0.0
        %2424 = vmatpush2.msra.mxu0 0.0
        %2425 = vmatprep.mubr.f32.mxu0 0.0
        %2426 = vmatmul.mubr.f32.gmra.mxu0 %v2359
        %v2427 = vpop.f32.mrf.mxu0
        %v2428 = vadd.f32 0.0, %v2427
        %v2429 = vpop.f32.mrf.mxu0
        %2430 = vdwg.mxu0
        %v2432 = vsel %vm1847, %v1895, 0
        %2434 = vmatprep.subr.mxu0 0.0
        %2435 = vmatpush1.msra.mxu0 0.0
        %2436 = vmatprep.subr.mxu0 0.0
        %2437 = vmatpush1.msra.mxu0 0.0
        %2438 = vmatprep.subr.mxu0 0.0
        %2439 = vmatpush1.msra.mxu0 0.0
        %2440 = vmatprep.subr.mxu0 0.0
        %2441 = vmatpush1.msra.mxu0 0.0
        %2442 = vmatprep.subr.mxu0 0.0
        %2443 = vmatpush1.msra.mxu0 0.0
        %2444 = vmatprep.subr.mxu0 0.0
        %2445 = vmatpush1.msra.mxu0 0.0
        %2446 = vmatprep.subr.mxu0 0.0
        %2447 = vmatpush1.msra.mxu0 0.0
        %2448 = vmatprep.subr.mxu0 0.0
        %2449 = vmatpush1.msra.mxu0 0.0
        %2450 = vmatprep.subr.mxu0 0.0
        %2451 = vmatpush1.msra.mxu0 0.0
        %2452 = vmatprep.subr.mxu0 0.0
        %2453 = vmatpush1.msra.mxu0 0.0
        %2454 = vmatprep.subr.mxu0 0.0
        %2455 = vmatpush1.msra.mxu0 0.0
        %2456 = vmatprep.subr.mxu0 0.0
        %2457 = vmatpush1.msra.mxu0 0.0
        %2458 = vmatprep.subr.mxu0 0.0
        %2459 = vmatpush1.msra.mxu0 0.0
        %2460 = vmatprep.subr.mxu0 0.0
        %2461 = vmatpush1.msra.mxu0 0.0
        %2462 = vmatprep.subr.mxu0 0.0
        %2463 = vmatpush1.msra.mxu0 0.0
        %2464 = vmatprep.subr.mxu0 0.0
        %2465 = vmatpush1.msra.mxu0 %v1224
        %2466 = vmatprep.subr.mxu0 0.0
        %2467 = vmatpush2.msra.mxu0 0.0
        %2468 = vmatprep.subr.mxu0 0.0
        %2469 = vmatpush2.msra.mxu0 0.0
        %2470 = vmatprep.subr.mxu0 0.0
        %2471 = vmatpush2.msra.mxu0 0.0
        %2472 = vmatprep.subr.mxu0 0.0
        %2473 = vmatpush2.msra.mxu0 0.0
        %2474 = vmatprep.subr.mxu0 0.0
        %2475 = vmatpush2.msra.mxu0 0.0
        %2476 = vmatprep.subr.mxu0 0.0
        %2477 = vmatpush2.msra.mxu0 0.0
        %2478 = vmatprep.subr.mxu0 0.0
        %2479 = vmatpush2.msra.mxu0 0.0
        %2480 = vmatprep.subr.mxu0 0.0
        %2481 = vmatpush2.msra.mxu0 0.0
        %2482 = vmatprep.subr.mxu0 0.0
        %2483 = vmatpush2.msra.mxu0 0.0
        %2484 = vmatprep.subr.mxu0 0.0
        %2485 = vmatpush2.msra.mxu0 0.0
        %2486 = vmatprep.subr.mxu0 0.0
        %2487 = vmatpush2.msra.mxu0 0.0
        %2488 = vmatprep.subr.mxu0 0.0
        %2489 = vmatpush2.msra.mxu0 0.0
        %2490 = vmatprep.subr.mxu0 0.0
        %2491 = vmatpush2.msra.mxu0 0.0
        %2492 = vmatprep.subr.mxu0 0.0
        %2493 = vmatpush2.msra.mxu0 0.0
        %2494 = vmatprep.subr.mxu0 0.0
        %2495 = vmatpush2.msra.mxu0 0.0
        %2496 = vmatprep.subr.mxu0 0.0
        %2497 = vmatpush2.msra.mxu0 0.0
        %2498 = vmatprep.mubr.f32.mxu0 0.0
        %2499 = vmatmul.mubr.f32.gmra.mxu0 %v2432
        %v2500 = vpop.f32.mrf.mxu0
        %v2501 = vadd.f32 0.0, %v2500
        %v2502 = vpop.f32.mrf.mxu0
        %2503 = vdwg.mxu0
        %v2504 = vrcp.pop %v1898
        %v2505 = vrcp.pop %v1901
        %v2506 = vrcp.pop %v1904
        %v2507 = vrcp.pop %v1907
        %v2508 = vrcp.pop %v1910
        %v2509 = vrcp.pop %v1913
        %v2510 = vrcp.pop %v1916
        %v2511 = vrcp.pop %v1919
        %v2512 = vmul.f32 %v1990, %v2504
        %v2513 = vmul.f32 %v2063, %v2505
        %v2514 = vmul.f32 %v2136, %v2506
        %v2515 = vmul.f32 %v2209, %v2507
        %v2516 = vmul.f32 %v2282, %v2508
        %v2517 = vmul.f32 %v2355, %v2509
        %v2518 = vmul.f32 %v2428, %v2510
        %v2519 = vmul.f32 %v2501, %v2511
        %v2520 = vcombine.low %v2512, %v2514
        %v2521 = vcombine.high %v2512, %v2514
        %v2523 = vunpack.c.l.s4 1983009808
        %v2524 = vunpack.c.0.s8 %v2523
        %v2525 = vlaneseq
        %v2526 = vshrl.u32 %v2525, 7
        %v2527 = vsub.s32 %v2524, %v2526
        %v2528 = vrot.slane %v2520, %v2527
        %v2530 = vunpack.c.l.s4 1983009808
        %v2531 = vunpack.c.0.s8 %v2530
        %v2532 = vlaneseq
        %v2533 = vshrl.u32 %v2532, 7
        %v2534 = vsub.s32 %v2531, %v2533
        %v2535 = vrot.slane %v2521, %v2534
        %v2536 = vcombine.low %v2513, %v2515
        %v2537 = vcombine.high %v2513, %v2515
        %v2539 = vunpack.c.l.s4 1983009808
        %v2540 = vunpack.c.0.s8 %v2539
        %v2541 = vlaneseq
        %v2542 = vshrl.u32 %v2541, 7
        %v2543 = vsub.s32 %v2540, %v2542
        %v2544 = vrot.slane %v2536, %v2543
        %v2546 = vunpack.c.l.s4 1983009808
        %v2547 = vunpack.c.0.s8 %v2546
        %v2548 = vlaneseq
        %v2549 = vshrl.u32 %v2548, 7
        %v2550 = vsub.s32 %v2547, %v2549
        %v2551 = vrot.slane %v2537, %v2550
        %v2552 = vcombine.low %v2516, %v2518
        %v2553 = vcombine.high %v2516, %v2518
        %v2555 = vunpack.c.l.s4 1983009808
        %v2556 = vunpack.c.0.s8 %v2555
        %v2557 = vlaneseq
        %v2558 = vshrl.u32 %v2557, 7
        %v2559 = vsub.s32 %v2556, %v2558
        %v2560 = vrot.slane %v2552, %v2559
        %v2562 = vunpack.c.l.s4 1983009808
        %v2563 = vunpack.c.0.s8 %v2562
        %v2564 = vlaneseq
        %v2565 = vshrl.u32 %v2564, 7
        %v2566 = vsub.s32 %v2563, %v2565
        %v2567 = vrot.slane %v2553, %v2566
        %v2568 = vcombine.low %v2517, %v2519
        %v2569 = vcombine.high %v2517, %v2519
        %v2571 = vunpack.c.l.s4 1983009808
        %v2572 = vunpack.c.0.s8 %v2571
        %v2573 = vlaneseq
        %v2574 = vshrl.u32 %v2573, 7
        %v2575 = vsub.s32 %v2572, %v2574
        %v2576 = vrot.slane %v2568, %v2575
        %v2578 = vunpack.c.l.s4 1983009808
        %v2579 = vunpack.c.0.s8 %v2578
        %v2580 = vlaneseq
        %v2581 = vshrl.u32 %v2580, 7
        %v2582 = vsub.s32 %v2579, %v2581
        %v2583 = vrot.slane %v2569, %v2582
        %v2584 = vcombine.low %v2528, %v2544
        %v2585 = vcombine.high %v2528, %v2544
        %v2587 = vunpack.c.l.s4 1934713408
        %v2588 = vunpack.c.0.s8 %v2587
        %v2589 = vlaneseq
        %v2590 = vshrl.u32 %v2589, 7
        %v2591 = vsub.s32 %v2588, %v2590
        %v2592 = vrot.slane %v2584, %v2591
        %v2594 = vunpack.c.l.s4 1934713408
        %v2595 = vunpack.c.0.s8 %v2594
        %v2596 = vlaneseq
        %v2597 = vshrl.u32 %v2596, 7
        %v2598 = vsub.s32 %v2595, %v2597
        %v2599 = vrot.slane %v2585, %v2598
        %v2600 = vcombine.low %v2535, %v2551
        %v2601 = vcombine.high %v2535, %v2551
        %v2603 = vunpack.c.l.s4 1934713408
        %v2604 = vunpack.c.0.s8 %v2603
        %v2605 = vlaneseq
        %v2606 = vshrl.u32 %v2605, 7
        %v2607 = vsub.s32 %v2604, %v2606
        %v2608 = vrot.slane %v2600, %v2607
        %v2610 = vunpack.c.l.s4 1934713408
        %v2611 = vunpack.c.0.s8 %v2610
        %v2612 = vlaneseq
        %v2613 = vshrl.u32 %v2612, 7
        %v2614 = vsub.s32 %v2611, %v2613
        %v2615 = vrot.slane %v2601, %v2614
        %v2616 = vcombine.low %v2560, %v2576
        %v2617 = vcombine.high %v2560, %v2576
        %v2619 = vunpack.c.l.s4 1934713408
        %v2620 = vunpack.c.0.s8 %v2619
        %v2621 = vlaneseq
        %v2622 = vshrl.u32 %v2621, 7
        %v2623 = vsub.s32 %v2620, %v2622
        %v2624 = vrot.slane %v2616, %v2623
        %v2626 = vunpack.c.l.s4 1934713408
        %v2627 = vunpack.c.0.s8 %v2626
        %v2628 = vlaneseq
        %v2629 = vshrl.u32 %v2628, 7
        %v2630 = vsub.s32 %v2627, %v2629
        %v2631 = vrot.slane %v2617, %v2630
        %v2632 = vcombine.low %v2567, %v2583
        %v2633 = vcombine.high %v2567, %v2583
        %v2635 = vunpack.c.l.s4 1934713408
        %v2636 = vunpack.c.0.s8 %v2635
        %v2637 = vlaneseq
        %v2638 = vshrl.u32 %v2637, 7
        %v2639 = vsub.s32 %v2636, %v2638
        %v2640 = vrot.slane %v2632, %v2639
        %v2642 = vunpack.c.l.s4 1934713408
        %v2643 = vunpack.c.0.s8 %v2642
        %v2644 = vlaneseq
        %v2645 = vshrl.u32 %v2644, 7
        %v2646 = vsub.s32 %v2643, %v2645
        %v2647 = vrot.slane %v2633, %v2646
        %v2648 = vcombine.low %v2592, %v2624
        %v2649 = vcombine.high %v2592, %v2624
        %v2650 = vcombine.low %v2599, %v2631
        %v2651 = vcombine.high %v2599, %v2631
        %v2652 = vcombine.low %v2608, %v2640
        %v2653 = vcombine.high %v2608, %v2640
        %v2654 = vcombine.low %v2615, %v2647
        %v2655 = vcombine.high %v2615, %v2647
        %v2656 = vcombine.low %v2648, %v2650
        %v2657 = vcombine.high %v2648, %v2650
        %v2659 = vunpack.c.l.s4 1983009808
        %v2660 = vunpack.c.0.s8 %v2659
        %v2661 = vlaneseq
        %v2662 = vshrl.u32 %v2661, 7
        %v2663 = vsub.s32 %v2660, %v2662
        %v2664 = vrot.slane %v2656, %v2663
        %v2666 = vunpack.c.l.s4 1983009808
        %v2667 = vunpack.c.0.s8 %v2666
        %v2668 = vlaneseq
        %v2669 = vshrl.u32 %v2668, 7
        %v2670 = vsub.s32 %v2667, %v2669
        %v2671 = vrot.slane %v2657, %v2670
        %v2672 = vcombine.low %v2649, %v2651
        %v2673 = vcombine.high %v2649, %v2651
        %v2675 = vunpack.c.l.s4 1983009808
        %v2676 = vunpack.c.0.s8 %v2675
        %v2677 = vlaneseq
        %v2678 = vshrl.u32 %v2677, 7
        %v2679 = vsub.s32 %v2676, %v2678
        %v2680 = vrot.slane %v2672, %v2679
        %v2682 = vunpack.c.l.s4 1983009808
        %v2683 = vunpack.c.0.s8 %v2682
        %v2684 = vlaneseq
        %v2685 = vshrl.u32 %v2684, 7
        %v2686 = vsub.s32 %v2683, %v2685
        %v2687 = vrot.slane %v2673, %v2686
        %v2688 = vcombine.low %v2652, %v2654
        %v2689 = vcombine.high %v2652, %v2654
        %v2691 = vunpack.c.l.s4 1983009808
        %v2692 = vunpack.c.0.s8 %v2691
        %v2693 = vlaneseq
        %v2694 = vshrl.u32 %v2693, 7
        %v2695 = vsub.s32 %v2692, %v2694
        %v2696 = vrot.slane %v2688, %v2695
        %v2698 = vunpack.c.l.s4 1983009808
        %v2699 = vunpack.c.0.s8 %v2698
        %v2700 = vlaneseq
        %v2701 = vshrl.u32 %v2700, 7
        %v2702 = vsub.s32 %v2699, %v2701
        %v2703 = vrot.slane %v2689, %v2702
        %v2704 = vcombine.low %v2653, %v2655
        %v2705 = vcombine.high %v2653, %v2655
        %v2707 = vunpack.c.l.s4 1983009808
        %v2708 = vunpack.c.0.s8 %v2707
        %v2709 = vlaneseq
        %v2710 = vshrl.u32 %v2709, 7
        %v2711 = vsub.s32 %v2708, %v2710
        %v2712 = vrot.slane %v2704, %v2711
        %v2714 = vunpack.c.l.s4 1983009808
        %v2715 = vunpack.c.0.s8 %v2714
        %v2716 = vlaneseq
        %v2717 = vshrl.u32 %v2716, 7
        %v2718 = vsub.s32 %v2715, %v2717
        %v2719 = vrot.slane %v2705, %v2718
        %v2720 = vcombine.low %v2664, %v2680
        %v2721 = vcombine.high %v2664, %v2680
        %v2723 = vunpack.c.l.s4 1934713408
        %v2724 = vunpack.c.0.s8 %v2723
        %v2725 = vlaneseq
        %v2726 = vshrl.u32 %v2725, 7
        %v2727 = vsub.s32 %v2724, %v2726
        %v2728 = vrot.slane %v2720, %v2727
        %v2730 = vunpack.c.l.s4 1934713408
        %v2731 = vunpack.c.0.s8 %v2730
        %v2732 = vlaneseq
        %v2733 = vshrl.u32 %v2732, 7
        %v2734 = vsub.s32 %v2731, %v2733
        %v2735 = vrot.slane %v2721, %v2734
        %v2736 = vcombine.low %v2671, %v2687
        %v2737 = vcombine.high %v2671, %v2687
        %v2739 = vunpack.c.l.s4 1934713408
        %v2740 = vunpack.c.0.s8 %v2739
        %v2741 = vlaneseq
        %v2742 = vshrl.u32 %v2741, 7
        %v2743 = vsub.s32 %v2740, %v2742
        %v2744 = vrot.slane %v2736, %v2743
        %v2746 = vunpack.c.l.s4 1934713408
        %v2747 = vunpack.c.0.s8 %v2746
        %v2748 = vlaneseq
        %v2749 = vshrl.u32 %v2748, 7
        %v2750 = vsub.s32 %v2747, %v2749
        %v2751 = vrot.slane %v2737, %v2750
        %v2752 = vcombine.low %v2696, %v2712
        %v2753 = vcombine.high %v2696, %v2712
        %v2755 = vunpack.c.l.s4 1934713408
        %v2756 = vunpack.c.0.s8 %v2755
        %v2757 = vlaneseq
        %v2758 = vshrl.u32 %v2757, 7
        %v2759 = vsub.s32 %v2756, %v2758
        %v2760 = vrot.slane %v2752, %v2759
        %v2762 = vunpack.c.l.s4 1934713408
        %v2763 = vunpack.c.0.s8 %v2762
        %v2764 = vlaneseq
        %v2765 = vshrl.u32 %v2764, 7
        %v2766 = vsub.s32 %v2763, %v2765
        %v2767 = vrot.slane %v2753, %v2766
        %v2768 = vcombine.low %v2703, %v2719
        %v2769 = vcombine.high %v2703, %v2719
        %v2771 = vunpack.c.l.s4 1934713408
        %v2772 = vunpack.c.0.s8 %v2771
        %v2773 = vlaneseq
        %v2774 = vshrl.u32 %v2773, 7
        %v2775 = vsub.s32 %v2772, %v2774
        %v2776 = vrot.slane %v2768, %v2775
        %v2778 = vunpack.c.l.s4 1934713408
        %v2779 = vunpack.c.0.s8 %v2778
        %v2780 = vlaneseq
        %v2781 = vshrl.u32 %v2780, 7
        %v2782 = vsub.s32 %v2779, %v2781
        %v2783 = vrot.slane %v2769, %v2782
        %v2784 = vcombine.low %v2728, %v2760
        %v2785 = vcombine.high %v2728, %v2760
        %v2786 = vcombine.low %v2735, %v2767
        %v2787 = vcombine.high %v2735, %v2767
        %v2788 = vcombine.low %v2744, %v2776
        %v2789 = vcombine.high %v2744, %v2776
        %v2790 = vcombine.low %v2751, %v2783
        %v2791 = vcombine.high %v2751, %v2783
        %2793 = vrot.lane.b32.xlu0 %v2785, 4
        %v2794 = vpop.permute.xlu0 %2793
        %2797 = vrot.lane.b32.xlu0 %v2786, 8
        %v2798 = vpop.permute.xlu0 %2797
        %2801 = vrot.lane.b32.xlu0 %v2787, 12
        %v2802 = vpop.permute.xlu0 %2801
        %2805 = vrot.lane.b32.xlu0 %v2788, 16
        %v2806 = vpop.permute.xlu0 %2805
        %2809 = vrot.lane.b32.xlu0 %v2789, 20
        %v2810 = vpop.permute.xlu0 %2809
        %2813 = vrot.lane.b32.xlu0 %v2790, 24
        %v2814 = vpop.permute.xlu0 %2813
        %2817 = vrot.lane.b32.xlu0 %v2791, 28
        %v2818 = vpop.permute.xlu0 %2817
        %v2820 = vsel %vm1225, %v2784, %v2794
        %v2821 = vsel %vm1847, %v2820, %v2798
        %vm2822 = vcmask 97280
        %v2823 = vsel %vm2822, %v2821, %v2802
        %vm2824 = vcmask 130048
        %v2825 = vsel %vm2824, %v2823, %v2806
        %vm2826 = vcmask 162816
        %v2827 = vsel %vm2826, %v2825, %v2810
        %vm2828 = vcmask 195584
        %v2829 = vsel %vm2828, %v2827, %v2814
        %vm2830 = vcmask 228352
        %v2831 = vsel %vm2830, %v2829, %v2818
        %v2832 = vld [vmem:[#allocation7] sm:$0xff]
        %v2833 = vld [vmem:[#allocation7 + $0x8] sm:$0xff]
        %v2834 = vld [vmem:[#allocation7 + $0x10] sm:$0xff]
        %v2835 = vld [vmem:[#allocation7 + $0x18] sm:$0xff]
        %v2836 = vld [vmem:[%s3] sm:$0x1]
        %v2838 = vlaneseq
        %v2839 = vshrl.u32 %v2838, 7
        %v2840 = vsub.s32 0, %v2839
        %v2841 = vrot.slane %v2836, %v2840
        %v2844 = vsel %vm265, %v2831, 0
        %2846 = vmatprep.subr.mxu0 0.0
        %2847 = vmatpush1.msra.mxu0 0.0
        %2848 = vmatprep.subr.mxu0 0.0
        %2849 = vmatpush1.msra.mxu0 0.0
        %2850 = vmatprep.subr.mxu0 0.0
        %2851 = vmatpush1.msra.mxu0 0.0
        %2852 = vmatprep.subr.mxu0 0.0
        %2853 = vmatpush1.msra.mxu0 0.0
        %2854 = vmatprep.subr.mxu0 0.0
        %2855 = vmatpush1.msra.mxu0 0.0
        %2856 = vmatprep.subr.mxu0 0.0
        %2857 = vmatpush1.msra.mxu0 0.0
        %2858 = vmatprep.subr.mxu0 0.0
        %2859 = vmatpush1.msra.mxu0 0.0
        %2860 = vmatprep.subr.mxu0 0.0
        %2861 = vmatpush1.msra.mxu0 0.0
        %2862 = vmatprep.subr.mxu0 0.0
        %2863 = vmatpush1.msra.mxu0 0.0
        %2864 = vmatprep.subr.mxu0 0.0
        %2865 = vmatpush1.msra.mxu0 0.0
        %2866 = vmatprep.subr.mxu0 0.0
        %2867 = vmatpush1.msra.mxu0 0.0
        %2868 = vmatprep.subr.mxu0 0.0
        %2869 = vmatpush1.msra.mxu0 0.0
        %2870 = vmatprep.subr.mxu0 0.0
        %2871 = vmatpush1.msra.mxu0 %v2835
        %2872 = vmatprep.subr.mxu0 0.0
        %2873 = vmatpush1.msra.mxu0 %v2834
        %2874 = vmatprep.subr.mxu0 0.0
        %2875 = vmatpush1.msra.mxu0 %v2833
        %2876 = vmatprep.subr.mxu0 0.0
        %2877 = vmatpush1.msra.mxu0 %v2832
        %2878 = vmatprep.subr.mxu0 0.0
        %2879 = vmatpush2.msra.mxu0 0.0
        %2880 = vmatprep.subr.mxu0 0.0
        %2881 = vmatpush2.msra.mxu0 0.0
        %2882 = vmatprep.subr.mxu0 0.0
        %2883 = vmatpush2.msra.mxu0 0.0
        %2884 = vmatprep.subr.mxu0 0.0
        %2885 = vmatpush2.msra.mxu0 0.0
        %2886 = vmatprep.subr.mxu0 0.0
        %2887 = vmatpush2.msra.mxu0 0.0
        %2888 = vmatprep.subr.mxu0 0.0
        %2889 = vmatpush2.msra.mxu0 0.0
        %2890 = vmatprep.subr.mxu0 0.0
        %2891 = vmatpush2.msra.mxu0 0.0
        %2892 = vmatprep.subr.mxu0 0.0
        %2893 = vmatpush2.msra.mxu0 0.0
        %2894 = vmatprep.subr.mxu0 0.0
        %2895 = vmatpush2.msra.mxu0 0.0
        %2896 = vmatprep.subr.mxu0 0.0
        %2897 = vmatpush2.msra.mxu0 0.0
        %2898 = vmatprep.subr.mxu0 0.0
        %2899 = vmatpush2.msra.mxu0 0.0
        %2900 = vmatprep.subr.mxu0 0.0
        %2901 = vmatpush2.msra.mxu0 0.0
        %2902 = vmatprep.subr.mxu0 0.0
        %2903 = vmatpush2.msra.mxu0 0.0
        %2904 = vmatprep.subr.mxu0 0.0
        %2905 = vmatpush2.msra.mxu0 0.0
        %2906 = vmatprep.subr.mxu0 0.0
        %2907 = vmatpush2.msra.mxu0 0.0
        %2908 = vmatprep.subr.mxu0 0.0
        %2909 = vmatpush2.msra.mxu0 0.0
        %2910 = vmatprep.mubr.f32.mxu0 0.0
        %2911 = vmatmul.mubr.f32.gmra.mxu0 %v2844
        %v2912 = vpop.f32.mrf.mxu0
        %v2913 = vadd.f32 %v2841, %v2912
        %v2914 = vpop.f32.mrf.mxu0
        %2915 = vdwg.mxu0
        %2916 = vst.msk [vmem:[%s259] sm:$0xff] %vm265, %v2913
        %s2917 = sand.u32 %s135, 1
        %s2918 = scalar_lea.sflag [#allocation4], %s2917
        %s2919 = sand.u32 %s135, 1
        %s2920 = smul.addr %s2919, 8
        %s2921 = scalar_lea.vmem [#allocation8], %s2920
        // Predicated region
        $region49: #{tpu_custom_call.1} parent=35 // pred_check
          %p2922 = pneg %p145
        $region50: #{tpu_custom_call.1} parent=35 // pred_check_branch
          %2924 = sbr.rel (%p2922) target = $region52
        $region51: #{tpu_custom_call.1} parent=35 // pred_region
          %s2926 = ssub.s32 128, 128
          %2927 = vsyncadd %s2918, %s2926
          %s2928 = smul.addr %s26, 8
          %s2929 = sadd.s32 %s27, %s2928
          %s2930 = smul.addr %s2929, 128
          %s2931 = scalar_lea.hbm %s4, %s2930
          %s2933 = sshll.u32 %s2921, 4
          %s2934 = int_to_ptr.vmem [resolvable:$true] %s2933
          %2936 = dma.vmem_to_hbm [thread:$0]  %s2934, 128, %s2931, %s2918
        $region52: #{tpu_custom_call.1} parent=35 // pred_fallthru
          _
      $region36: #{tpu_custom_call.1} parent=5 // pred_fallthru
        _
      %p2937 = scmp.le.s32.totalorder 2, %s17
      // Predicated region
      $region53: #{tpu_custom_call.1} parent=5 // pred_check
        %p2938 = pneg %p2937
      $region54: #{tpu_custom_call.1} parent=5 // pred_check_branch
        %2940 = sbr.rel (%p2938) target = $region56
      $region55: #{tpu_custom_call.1} parent=5 // pred_region
        %s2941 = ssub.s32 %s17, 2
        // Predicated region
        $region57: #{tpu_custom_call.1} parent=55 // pred_check
          %p2942 = pneg %p151
        $region58: #{tpu_custom_call.1} parent=55 // pred_check_branch
          %2944 = sbr.rel (%p2942) target = $region60
        $region59: #{tpu_custom_call.1} parent=55 // pred_region
          %s2945 = sand.u32 %s136, 1
          %s2946 = scalar_lea.sflag [#allocation4], %s2945
          %s2947 = sand.u32 %s136, 1
          %s2948 = smul.addr %s2947, 8
          %s2949 = scalar_lea.vmem [#allocation8], %s2948
          %2950 = dma.done %s2946, 128
        $region60: #{tpu_custom_call.1} parent=55 // pred_fallthru
          _
      $region56: #{tpu_custom_call.1} parent=5 // pred_fallthru
        _
    $region6: #{tpu_custom_call.1} parent=1 // loop_footer
      %s21 = sadd.s32 1, %s17
    $region7: #{tpu_custom_call.1} parent=1 // loop_footer_branch
      %16 = sbr.rel target = $region3
    $region8: #{tpu_custom_call.1} parent=1 // loop_exit
      _
    %2951 = vsyncpa [#allocation3], 1
    %s2952 = scalar_lea.sflag [#allocation3], 1
    %2953 = vsyncpa %s2952, 1
    %2954 = vsyncpa [#allocation6], 1
    %2955 = vsyncpa [#allocation4], 1
    %s2956 = scalar_lea.sflag [#allocation4], 1
    %2957 = vsyncpa %s2956, 1

</llo_original>
